<compile_context>
chip_gen: v7x
topology: tpu7x:2x2x1
jax: 0.10.0
libtpu: 0.0.40
codegen_flags: <defaults>
</compile_context>

<pallas_src>
import jax
import jax.numpy as jnp
from jax.experimental import pallas as pl
from jax.experimental.pallas import tpu as pltpu


def _sigmoid(z):
    # exact identity sigmoid(z) = 0.5 * (1 + tanh(z/2)); tanh lowers to the EUP.
    return 0.5 * (jnp.tanh(0.5 * z) + 1.0)


def _decoder_step_kernel(xh_ref, hid_ref, cell_ref, enc_ref,
                         wh_ref, we_ref, battn_ref, v_ref,
                         wxh_ref, wic_ref, blstm_ref,
                         wf_ref, bfc_ref,
                         out_ref,
                         hpart_s, m_s, l_s, ctx_s):
    s_idx = pl.program_id(0)
    B, TS, H = enc_ref.shape

    @pl.when(s_idx == 0)
    def _():
        # hidden part of the attention energy: computed once, reused by every S-tile.
        hpart_s[...] = (jnp.dot(hid_ref[...], wh_ref[...],
                                preferred_element_type=jnp.float32) + battn_ref[...])
        m_s[...] = jnp.full((B, 1), -jnp.inf, jnp.float32)
        l_s[...] = jnp.zeros((B, 1), jnp.float32)
        ctx_s[...] = jnp.zeros((B, H), jnp.float32)

    # ---------------- Bahdanau attention on this S-tile (online softmax) ----------------
    enc_t = enc_ref[...]                                               # (B, TS, H) bf16
    epart = jnp.dot(enc_t.reshape(B * TS, H), we_ref[...],
                    preferred_element_type=jnp.float32).reshape(B, TS, H)
    energy = jnp.tanh(epart + hpart_s[...][:, None, :])                # (B, TS, H) f32
    scores = jnp.sum(energy * v_ref[...], axis=-1)                     # (B, TS) lane-dense

    m_prev = m_s[...]                                                  # (B, 1)
    m_new = jnp.maximum(m_prev, jnp.max(scores, axis=-1, keepdims=True))
    alpha = jnp.exp(m_prev - m_new)                                    # (B, 1)
    p = jnp.exp(scores - m_new)                                        # (B, TS)
    l_s[...] = alpha * l_s[...] + jnp.sum(p, axis=-1, keepdims=True)
    # bf16->f32 upcast fused into the weighted sum; no full f32 enc copy materialized.
    ctx_s[...] = alpha * ctx_s[...] + jnp.sum(p[:, :, None] * enc_t, axis=1)
    m_s[...] = m_new

    # ---------------- last S-tile: single LSTM step + fc head ----------------
    @pl.when(s_idx == pl.num_programs(0) - 1)
    def _():
        context = ctx_s[...] * pl.reciprocal(l_s[...], approx=True)    # (B, H) f32

        # gates = [x, hid] @ [Wx; Whh] + context @ Wic + (b_ih + b_hh)   (bf16 in, f32 acc)
        gates = (jnp.dot(xh_ref[...], wxh_ref[...], preferred_element_type=jnp.float32)
                 + jnp.dot(context.astype(jnp.bfloat16), wic_ref[...],
                           preferred_element_type=jnp.float32)
                 + blstm_ref[...])                                      # (B, 4H)
        i_g = _sigmoid(gates[:, 0:H])
        f_g = _sigmoid(gates[:, H:2 * H])
        g_g = jnp.tanh(gates[:, 2 * H:3 * H])
        o_g = _sigmoid(gates[:, 3 * H:])
        c_new = f_g * cell_ref[...] + i_g * g_g
        h_new = o_g * jnp.tanh(c_new)

        # fc(cat([h_new, context])) as one bf16 MXU dot against a stacked (2H, O) weight.
        hc = jnp.concatenate([h_new, context], axis=-1).astype(jnp.bfloat16)
        pred = jnp.dot(hc, wf_ref[...], preferred_element_type=jnp.float32) + bfc_ref[...]

        # single lane-dense packed store; wrapper unpacks [h_new | c_new | pred | pad].
        o_dim = pred.shape[-1]
        pad = out_ref.shape[-1] - (2 * H + o_dim)
        pieces = [h_new, c_new, pred]
        if pad:
            pieces.append(jnp.zeros((B, pad), jnp.float32))
        out_ref[...] = jnp.concatenate(pieces, axis=-1)


def prepare_params(W_attn, b_attn, v_attn, W_ih, W_hh, b_ih, b_hh, W_fc, b_fc, input_size):
    """Pre-split / pre-transpose / pre-cast weights once (kept persistent across calls)."""
    H = W_attn.shape[0]
    I = input_size
    return dict(
        Wh=W_attn[:, :H].T.astype(jnp.bfloat16),                 # (H, H)  acts on decoder hidden
        We=W_attn[:, H:].T.astype(jnp.bfloat16),                 # (H, H)  acts on encoder outputs
        b_attn=b_attn.reshape(1, H).astype(jnp.float32),
        v_attn=v_attn.reshape(1, H).astype(jnp.float32),
        # gates = [x, hid] @ Wxh + context @ Wic + (b_ih + b_hh)
        Wxh=jnp.concatenate([W_ih[:, :I].T, W_hh.T], axis=0).astype(jnp.bfloat16),  # (I+H, 4H)
        Wic=W_ih[:, I:].T.astype(jnp.bfloat16),                  # (H, 4H) acts on attention context
        b_lstm=(b_ih + b_hh).reshape(1, -1).astype(jnp.float32),
        # pred = [h_new, context] @ W_fc.T + b_fc
        Wf=W_fc.T.astype(jnp.bfloat16),                          # (2H, O)
        b_fc=b_fc.reshape(1, -1).astype(jnp.float32),
    )


def _pick_s_tile(S):
    for ts in (512, 256, 128, 64, 32, 16, 8):
        if S % ts == 0:
            return ts
    return S


def sequence_decoder_step(x, hidden, cell, encoder_outputs, p, s_tile=None):
    """x: (B,1,I); hidden/cell: (1,B,H); encoder_outputs: (B,S,H) (f32 or bf16)."""
    B, S, H = encoder_outputs.shape
    I = x.shape[-1]
    O = p["b_fc"].shape[-1]

    ts = _pick_s_tile(S) if s_tile is None else s_tile
    assert S % ts == 0, f"seq_len {S} must be divisible by the S tile {ts}"
    num_s_tiles = S // ts
    P = ((2 * H + O + 127) // 128) * 128    # packed, lane-dense output width

    # [x, hidden[-1]] concatenated once in the wrapper -> one stacked gate dot in-kernel.
    xh = jnp.concatenate([x.reshape(B, I), hidden[-1]], axis=-1).astype(jnp.bfloat16)
    hid_bf = hidden[-1].astype(jnp.bfloat16)
    cel = cell[-1].astype(jnp.float32)
    # Only cast if the producer did not already emit bf16 (avoids an extra HBM pass).
    enc_bf = (encoder_outputs if encoder_outputs.dtype == jnp.bfloat16
              else encoder_outputs.astype(jnp.bfloat16))

    out = pl.pallas_call(
        _decoder_step_kernel,
        out_shape=jax.ShapeDtypeStruct((B, P), jnp.float32),
        grid_spec=pltpu.PrefetchScalarGridSpec(
            num_scalar_prefetch=0,
            grid=(num_s_tiles,),                                   # online-softmax reduction axis
            in_specs=[
                pl.BlockSpec((B, I + H), lambda s: (0, 0)),        # [x, hid]          bf16
                pl.BlockSpec((B, H), lambda s: (0, 0)),            # hidden[-1]        bf16
                pl.BlockSpec((B, H), lambda s: (0, 0)),            # cell[-1]          f32
                pl.BlockSpec((B, ts, H), lambda s: (0, s, 0)),     # encoder S-tile    bf16
                pl.BlockSpec((H, H), lambda s: (0, 0)),            # Wh                bf16
                pl.BlockSpec((H, H), lambda s: (0, 0)),            # We                bf16
                pl.BlockSpec((1, H), lambda s: (0, 0)),            # attn bias         f32
                pl.BlockSpec((1, H), lambda s: (0, 0)),            # v                 f32
                pl.BlockSpec((I + H, 4 * H), lambda s: (0, 0)),    # [Wx; Whh]         bf16
                pl.BlockSpec((H, 4 * H), lambda s: (0, 0)),        # Wic (context)     bf16
                pl.BlockSpec((1, 4 * H), lambda s: (0, 0)),        # b_ih + b_hh       f32
                pl.BlockSpec((2 * H, O), lambda s: (0, 0)),        # W_fc.T            bf16
                pl.BlockSpec((1, O), lambda s: (0, 0)),            # fc bias           f32
            ],
            out_specs=pl.BlockSpec((B, P), lambda s: (0, 0)),      # packed lane-dense slab
            scratch_shapes=[
                pltpu.VMEM((B, H), jnp.float32),   # hpart (hidden @ Wh + b)
                pltpu.VMEM((B, 1), jnp.float32),   # running max  m
                pltpu.VMEM((B, 1), jnp.float32),   # running sum  l
                pltpu.VMEM((B, H), jnp.float32),   # running context accumulator
            ],
        ),
        compiler_params=pltpu.CompilerParams(
            dimension_semantics=("arbitrary",),
            vmem_limit_bytes=64 * 1024 * 1024,
        ),
    )(xh, hid_bf, cel, enc_bf,
      p["Wh"], p["We"], p["b_attn"], p["v_attn"],
      p["Wxh"], p["Wic"], p["b_lstm"],
      p["Wf"], p["b_fc"])

    h_new = out[:, :H]
    c_new = out[:, H:2 * H]
    pred = out[:, 2 * H:2 * H + O]
    return pred.reshape(B, 1, O), h_new.reshape(1, B, H), c_new.reshape(1, B, H)


def sequence_decoder_reference(x, hidden, cell, enc,
                               W_attn, b_attn, v_attn,
                               W_ih, W_hh, b_ih, b_hh, W_fc, b_fc):
    """Pure-JAX f32 reference matching the PyTorch SequenceDecoder.forward exactly."""
    B, S, H = enc.shape
    h_last = hidden[-1]
    c_last = cell[-1]
    # Bahdanau attention
    hid_rep = jnp.repeat(h_last[:, None, :], S, axis=1)
    cat = jnp.concatenate([hid_rep, enc], axis=2)
    energy = jnp.tanh(jnp.einsum("bsk,hk->bsh", cat, W_attn) + b_attn)
    scores = jnp.einsum("bsh,h->bs", energy, v_attn)
    weights = jax.nn.softmax(scores, axis=1)
    context = jnp.einsum("bs,bsh->bh", weights, enc)
    # single LSTM step
    xin = jnp.concatenate([x[:, 0, :], context], axis=-1)
    gates = xin @ W_ih.T + b_ih + h_last @ W_hh.T + b_hh
    i = jax.nn.sigmoid(gates[:, :H])
    f = jax.nn.sigmoid(gates[:, H:2 * H])
    g = jnp.tanh(gates[:, 2 * H:3 * H])
    o = jax.nn.sigmoid(gates[:, 3 * H:])
    c_new = f * c_last + i * g
    h_new = o * jnp.tanh(c_new)
    # fc head
    pred = jnp.concatenate([h_new, context], axis=-1) @ W_fc.T + b_fc
    return pred[:, None, :], h_new[None], c_new[None]


if __name__ == "__main__":
    key = jax.random.PRNGKey(0)
    B, S, I, H, O = 2, 32, 16, 32, 5

    ks = jax.random.split(key, 12)
    x = jax.random.normal(ks[0], (B, 1, I), dtype=jnp.float32)
    hidden = jax.random.normal(ks[1], (1, B, H), dtype=jnp.float32)
    cell = jax.random.normal(ks[2], (1, B, H), dtype=jnp.float32)
    encoder_outputs = jax.random.normal(ks[3], (B, S, H), dtype=jnp.float32)

    attn_bound = 1.0 / jnp.sqrt(jnp.float32(2 * H))
    W_attn = jax.random.uniform(ks[4], (H, 2 * H), minval=-attn_bound, maxval=attn_bound, dtype=jnp.float32)
    b_attn = jax.random.uniform(ks[5], (H,), minval=-attn_bound, maxval=attn_bound, dtype=jnp.float32)
    v_attn = 0.1 * jax.random.normal(ks[6], (H,), dtype=jnp.float32)

    lstm_bound = 1.0 / jnp.sqrt(jnp.float32(H))
    W_ih = jax.random.uniform(ks[7], (4 * H, I + H), minval=-lstm_bound, maxval=lstm_bound, dtype=jnp.float32)
    W_hh = jax.random.uniform(ks[8], (4 * H, H), minval=-lstm_bound, maxval=lstm_bound, dtype=jnp.float32)
    b_ih = jax.random.uniform(ks[9], (4 * H,), minval=-lstm_bound, maxval=lstm_bound, dtype=jnp.float32)
    b_hh = jax.random.uniform(ks[10], (4 * H,), minval=-lstm_bound, maxval=lstm_bound, dtype=jnp.float32)

    fc_bound = 1.0 / jnp.sqrt(jnp.float32(2 * H))
    kfc1, kfc2 = jax.random.split(ks[11])
    W_fc = jax.random.uniform(kfc1, (O, 2 * H), minval=-fc_bound, maxval=fc_bound, dtype=jnp.float32)
    b_fc = jax.random.uniform(kfc2, (O,), minval=-fc_bound, maxval=fc_bound, dtype=jnp.float32)

    params = prepare_params(W_attn, b_attn, v_attn, W_ih, W_hh, b_ih, b_hh, W_fc, b_fc, input_size=I)

    # s_tile=16 -> grid=(2,): exercises the multi-tile online-softmax path.
    pred, h_new, c_new = sequence_decoder_step(x, hidden, cell, encoder_outputs, params, s_tile=16)
    pred = jax.block_until_ready(pred)

    pred_ref, h_ref, c_ref = sequence_decoder_reference(
        x, hidden, cell, encoder_outputs,
        W_attn, b_attn, v_attn, W_ih, W_hh, b_ih, b_hh, W_fc, b_fc)

    assert pred.shape == (B, 1, O)
    assert h_new.shape == (1, B, H)
    assert c_new.shape == (1, B, H)

    # All matmuls run with bf16 MXU operands (f32 accumulate) -> loosen tolerance vs f32 ref.
    for got, ref, name in ((pred, pred_ref, "predictions"),
                           (h_new, h_ref, "hidden"),
                           (c_new, c_ref, "cell")):
        err = float(jnp.max(jnp.abs(got - ref)))
        assert jnp.allclose(got, ref, atol=3e-2, rtol=3e-2), f"{name} mismatch, max abs err {err}"

    print("KERNEL_OK")
</pallas_src>

<mosaic_0001>
module attributes {stable_mosaic.version = 11 : i64} {
  func.func @_decoder_step_kernel(%arg0: i32, %arg1: memref<2x48xbf16, #tpu.memory_space<vmem>>, %arg2: memref<2x32xbf16, #tpu.memory_space<vmem>>, %arg3: memref<2x32xf32, #tpu.memory_space<vmem>>, %arg4: memref<2x16x32xbf16, #tpu.memory_space<vmem>>, %arg5: memref<32x32xbf16, #tpu.memory_space<vmem>>, %arg6: memref<32x32xbf16, #tpu.memory_space<vmem>>, %arg7: memref<1x32xf32, #tpu.memory_space<vmem>>, %arg8: memref<1x32xf32, #tpu.memory_space<vmem>>, %arg9: memref<48x128xbf16, #tpu.memory_space<vmem>>, %arg10: memref<32x128xbf16, #tpu.memory_space<vmem>>, %arg11: memref<1x128xf32, #tpu.memory_space<vmem>>, %arg12: memref<64x5xbf16, #tpu.memory_space<vmem>>, %arg13: memref<1x5xf32, #tpu.memory_space<vmem>>, %arg14: memref<2x128xf32, #tpu.memory_space<vmem>>, %arg15: memref<2x32xf32, #tpu.memory_space<vmem>>, %arg16: memref<2x1xf32, #tpu.memory_space<vmem>>, %arg17: memref<2x1xf32, #tpu.memory_space<vmem>>, %arg18: memref<2x32xf32, #tpu.memory_space<vmem>>) attributes {dimension_semantics = [#tpu.dimension_semantics<arbitrary>], iteration_bounds = array<i64: 2>, scalar_prefetch = 0 : i64, scratch_operands = 4 : i64, tpu.core_type = #tpu.core_type<tc>, window_params = [{pipeline_mode = #tpu.pipeline_mode<synchronous>, transform_indices = @transform_0, window_bounds = array<i64: 2, 48>}, {pipeline_mode = #tpu.pipeline_mode<synchronous>, transform_indices = @transform_1, window_bounds = array<i64: 2, 32>}, {pipeline_mode = #tpu.pipeline_mode<synchronous>, transform_indices = @transform_2, window_bounds = array<i64: 2, 32>}, {transform_indices = @transform_3, window_bounds = array<i64: 2, 16, 32>}, {pipeline_mode = #tpu.pipeline_mode<synchronous>, transform_indices = @transform_4, window_bounds = array<i64: 32, 32>}, {pipeline_mode = #tpu.pipeline_mode<synchronous>, transform_indices = @transform_5, window_bounds = array<i64: 32, 32>}, {pipeline_mode = #tpu.pipeline_mode<synchronous>, transform_indices = @transform_6, window_bounds = array<i64: 1, 32>}, {pipeline_mode = #tpu.pipeline_mode<synchronous>, transform_indices = @transform_7, window_bounds = array<i64: 1, 32>}, {pipeline_mode = #tpu.pipeline_mode<synchronous>, transform_indices = @transform_8, window_bounds = array<i64: 48, 128>}, {pipeline_mode = #tpu.pipeline_mode<synchronous>, transform_indices = @transform_9, window_bounds = array<i64: 32, 128>}, {pipeline_mode = #tpu.pipeline_mode<synchronous>, transform_indices = @transform_10, window_bounds = array<i64: 1, 128>}, {pipeline_mode = #tpu.pipeline_mode<synchronous>, transform_indices = @transform_11, window_bounds = array<i64: 64, 5>}, {pipeline_mode = #tpu.pipeline_mode<synchronous>, transform_indices = @transform_12, window_bounds = array<i64: 1, 5>}, {pipeline_mode = #tpu.pipeline_mode<synchronous>, transform_indices = @transform_13, window_bounds = array<i64: 2, 128>}]} {
    %c0_i32 = arith.constant 0 : i32
    %0 = arith.cmpi eq, %arg0, %c0_i32 : i32
    %1 = arith.extui %0 : i1 to i32
    %c0_i32_0 = arith.constant 0 : i32
    %2 = arith.cmpi ne, %1, %c0_i32_0 : i32
    scf.if %2 {
      %c0_26 = arith.constant 0 : index
      %c0_27 = arith.constant 0 : index
      %47 = vector.load %arg2[%c0_26, %c0_27] : memref<2x32xbf16, #tpu.memory_space<vmem>>, vector<2x32xbf16>
      %c0_28 = arith.constant 0 : index
      %c0_29 = arith.constant 0 : index
      %48 = vector.load %arg5[%c0_28, %c0_29] : memref<32x32xbf16, #tpu.memory_space<vmem>>, vector<32x32xbf16>
      %cst_30 = arith.constant dense<0.000000e+00> : vector<2x32xf32>
      %49 = tpu.matmul %47, %48, %cst_30 {dimension_numbers = #tpu.dot_dimension_numbers<[1], [0], [0], [1], [0, 0, 1, 1], [], []>} : vector<2x32xbf16>, vector<32x32xbf16>, vector<2x32xf32> -> vector<2x32xf32>
      %c0_31 = arith.constant 0 : index
      %c0_32 = arith.constant 0 : index
      %50 = vector.load %arg7[%c0_31, %c0_32] : memref<1x32xf32, #tpu.memory_space<vmem>>, vector<1x32xf32>
      %51 = vector.broadcast %50 : vector<1x32xf32> to vector<2x32xf32>
      %52 = arith.addf %49, %51 : vector<2x32xf32>
      %c0_33 = arith.constant 0 : index
      %c0_34 = arith.constant 0 : index
      %53 = vector.load %arg15[%c0_33, %c0_34] : memref<2x32xf32, #tpu.memory_space<vmem>>, vector<2x32xf32>
      tpu.vector_store %arg15[%c0_33, %c0_34], %52 {strides = array<i32>} : memref<2x32xf32, #tpu.memory_space<vmem>>, vector<2x32xf32>,
      %cst_35 = arith.constant 0xFF800000 : f32
      %54 = vector.broadcast %cst_35 : f32 to vector<2x1xf32>
      %c0_36 = arith.constant 0 : index
      %c0_37 = arith.constant 0 : index
      %55 = vector.load %arg16[%c0_36, %c0_37] : memref<2x1xf32, #tpu.memory_space<vmem>>, vector<2x1xf32>
      tpu.vector_store %arg16[%c0_36, %c0_37], %54 {strides = array<i32>} : memref<2x1xf32, #tpu.memory_space<vmem>>, vector<2x1xf32>,
      %cst_38 = arith.constant 0.000000e+00 : f32
      %56 = vector.broadcast %cst_38 : f32 to vector<2x1xf32>
      %c0_39 = arith.constant 0 : index
      %c0_40 = arith.constant 0 : index
      %57 = vector.load %arg17[%c0_39, %c0_40] : memref<2x1xf32, #tpu.memory_space<vmem>>, vector<2x1xf32>
      tpu.vector_store %arg17[%c0_39, %c0_40], %56 {strides = array<i32>} : memref<2x1xf32, #tpu.memory_space<vmem>>, vector<2x1xf32>,
      %cst_41 = arith.constant 0.000000e+00 : f32
      %58 = vector.broadcast %cst_41 : f32 to vector<2x32xf32>
      %c0_42 = arith.constant 0 : index
      %c0_43 = arith.constant 0 : index
      %59 = vector.load %arg18[%c0_42, %c0_43] : memref<2x32xf32, #tpu.memory_space<vmem>>, vector<2x32xf32>
      tpu.vector_store %arg18[%c0_42, %c0_43], %58 {strides = array<i32>} : memref<2x32xf32, #tpu.memory_space<vmem>>, vector<2x32xf32>,
    } else {
    }
    %c0 = arith.constant 0 : index
    %c0_1 = arith.constant 0 : index
    %c0_2 = arith.constant 0 : index
    %3 = vector.load %arg4[%c0, %c0_1, %c0_2] : memref<2x16x32xbf16, #tpu.memory_space<vmem>>, vector<2x16x32xbf16>
    %4 = vector.shape_cast %3 : vector<2x16x32xbf16> to vector<32x32xbf16>
    %c0_3 = arith.constant 0 : index
    %c0_4 = arith.constant 0 : index
    %5 = vector.load %arg6[%c0_3, %c0_4] : memref<32x32xbf16, #tpu.memory_space<vmem>>, vector<32x32xbf16>
    %cst = arith.constant dense<0.000000e+00> : vector<32x32xf32>
    %6 = tpu.matmul %4, %5, %cst {dimension_numbers = #tpu.dot_dimension_numbers<[1], [0], [0], [1], [0, 0, 1, 1], [], []>} : vector<32x32xbf16>, vector<32x32xbf16>, vector<32x32xf32> -> vector<32x32xf32>
    %7 = vector.shape_cast %6 : vector<32x32xf32> to vector<2x16x32xf32>
    %c0_5 = arith.constant 0 : index
    %c0_6 = arith.constant 0 : index
    %8 = vector.load %arg15[%c0_5, %c0_6] : memref<2x32xf32, #tpu.memory_space<vmem>>, vector<2x32xf32>
    %9 = vector.shape_cast %8 : vector<2x32xf32> to vector<2x1x32xf32>
    %10 = vector.broadcast %9 : vector<2x1x32xf32> to vector<2x16x32xf32>
    %11 = arith.addf %7, %10 : vector<2x16x32xf32>
    %12 = math.tanh %11 : vector<2x16x32xf32>
    %c0_7 = arith.constant 0 : index
    %c0_8 = arith.constant 0 : index
    %13 = vector.load %arg8[%c0_7, %c0_8] : memref<1x32xf32, #tpu.memory_space<vmem>>, vector<1x32xf32>
    %14 = vector.shape_cast %13 : vector<1x32xf32> to vector<1x1x32xf32>
    %15 = vector.broadcast %14 : vector<1x1x32xf32> to vector<2x16x32xf32>
    %16 = arith.mulf %12, %15 : vector<2x16x32xf32>
    %cst_9 = arith.constant dense<0.000000e+00> : vector<2x16xf32>
    %17 = vector.multi_reduction <add>, %16, %cst_9 [2] : vector<2x16x32xf32> to vector<2x16xf32>
    %c0_10 = arith.constant 0 : index
    %c0_11 = arith.constant 0 : index
    %18 = vector.load %arg16[%c0_10, %c0_11] : memref<2x1xf32, #tpu.memory_space<vmem>>, vector<2x1xf32>
    %cst_12 = arith.constant dense<0xFF800000> : vector<2xf32>
    %19 = vector.multi_reduction <maximumf>, %17, %cst_12 [1] : vector<2x16xf32> to vector<2xf32>
    %20 = vector.shape_cast %19 : vector<2xf32> to vector<2x1xf32>
    %21 = arith.maximumf %18, %20 : vector<2x1xf32>
    %22 = arith.subf %18, %21 : vector<2x1xf32>
    %23 = math.exp %22 : vector<2x1xf32>
    %24 = vector.broadcast %21 : vector<2x1xf32> to vector<2x16xf32>
    %25 = arith.subf %17, %24 : vector<2x16xf32>
    %26 = math.exp %25 : vector<2x16xf32>
    %c0_13 = arith.constant 0 : index
    %c0_14 = arith.constant 0 : index
    %27 = vector.load %arg17[%c0_13, %c0_14] : memref<2x1xf32, #tpu.memory_space<vmem>>, vector<2x1xf32>
    %28 = arith.mulf %23, %27 : vector<2x1xf32>
    %cst_15 = arith.constant dense<0.000000e+00> : vector<2xf32>
    %29 = vector.multi_reduction <add>, %26, %cst_15 [1] : vector<2x16xf32> to vector<2xf32>
    %30 = vector.shape_cast %29 : vector<2xf32> to vector<2x1xf32>
    %31 = arith.addf %28, %30 : vector<2x1xf32>
    %c0_16 = arith.constant 0 : index
    %c0_17 = arith.constant 0 : index
    %32 = vector.load %arg17[%c0_16, %c0_17] : memref<2x1xf32, #tpu.memory_space<vmem>>, vector<2x1xf32>
    tpu.vector_store %arg17[%c0_16, %c0_17], %31 {strides = array<i32>} : memref<2x1xf32, #tpu.memory_space<vmem>>, vector<2x1xf32>,
    %c0_18 = arith.constant 0 : index
    %c0_19 = arith.constant 0 : index
    %33 = vector.load %arg18[%c0_18, %c0_19] : memref<2x32xf32, #tpu.memory_space<vmem>>, vector<2x32xf32>
    %34 = vector.broadcast %23 : vector<2x1xf32> to vector<2x32xf32>
    %35 = arith.mulf %34, %33 : vector<2x32xf32>
    %36 = vector.shape_cast %26 : vector<2x16xf32> to vector<2x16x1xf32>
    %37 = arith.extf %3 : vector<2x16x32xbf16> to vector<2x16x32xf32>
    %38 = vector.broadcast %36 : vector<2x16x1xf32> to vector<2x16x32xf32>
    %39 = arith.mulf %38, %37 : vector<2x16x32xf32>
    %cst_20 = arith.constant dense<0.000000e+00> : vector<2x32xf32>
    %40 = vector.multi_reduction <add>, %39, %cst_20 [1] : vector<2x16x32xf32> to vector<2x32xf32>
    %41 = arith.addf %35, %40 : vector<2x32xf32>
    %c0_21 = arith.constant 0 : index
    %c0_22 = arith.constant 0 : index
    %42 = vector.load %arg18[%c0_21, %c0_22] : memref<2x32xf32, #tpu.memory_space<vmem>>, vector<2x32xf32>
    tpu.vector_store %arg18[%c0_21, %c0_22], %41 {strides = array<i32>} : memref<2x32xf32, #tpu.memory_space<vmem>>, vector<2x32xf32>,
    %c0_23 = arith.constant 0 : index
    %c0_24 = arith.constant 0 : index
    %43 = vector.load %arg16[%c0_23, %c0_24] : memref<2x1xf32, #tpu.memory_space<vmem>>, vector<2x1xf32>
    tpu.vector_store %arg16[%c0_23, %c0_24], %21 {strides = array<i32>} : memref<2x1xf32, #tpu.memory_space<vmem>>, vector<2x1xf32>,
    %c1_i32 = arith.constant 1 : i32
    %44 = arith.cmpi eq, %arg0, %c1_i32 : i32
    %45 = arith.extui %44 : i1 to i32
    %c0_i32_25 = arith.constant 0 : i32
    %46 = arith.cmpi ne, %45, %c0_i32_25 : i32
    scf.if %46 {
      %c0_26 = arith.constant 0 : index
      %c0_27 = arith.constant 0 : index
      %47 = vector.load %arg18[%c0_26, %c0_27] : memref<2x32xf32, #tpu.memory_space<vmem>>, vector<2x32xf32>
      %c0_28 = arith.constant 0 : index
      %c0_29 = arith.constant 0 : index
      %48 = vector.load %arg17[%c0_28, %c0_29] : memref<2x1xf32, #tpu.memory_space<vmem>>, vector<2x1xf32>
      %49 = tpu.reciprocal %48 {approx = true} : vector<2x1xf32> -> vector<2x1xf32>
      %50 = vector.broadcast %49 : vector<2x1xf32> to vector<2x32xf32>
      %51 = arith.mulf %47, %50 : vector<2x32xf32>
      %c0_30 = arith.constant 0 : index
      %c0_31 = arith.constant 0 : index
      %52 = vector.load %arg1[%c0_30, %c0_31] : memref<2x48xbf16, #tpu.memory_space<vmem>>, vector<2x48xbf16>
      %c0_32 = arith.constant 0 : index
      %c0_33 = arith.constant 0 : index
      %53 = vector.load %arg9[%c0_32, %c0_33] : memref<48x128xbf16, #tpu.memory_space<vmem>>, vector<48x128xbf16>
      %cst_34 = arith.constant dense<0.000000e+00> : vector<2x128xf32>
      %54 = tpu.matmul %52, %53, %cst_34 {dimension_numbers = #tpu.dot_dimension_numbers<[1], [0], [0], [1], [0, 0, 1, 1], [], []>} : vector<2x48xbf16>, vector<48x128xbf16>, vector<2x128xf32> -> vector<2x128xf32>
      %55 = arith.truncf %51 : vector<2x32xf32> to vector<2x32xbf16>
      %c0_35 = arith.constant 0 : index
      %c0_36 = arith.constant 0 : index
      %56 = vector.load %arg10[%c0_35, %c0_36] : memref<32x128xbf16, #tpu.memory_space<vmem>>, vector<32x128xbf16>
      %cst_37 = arith.constant dense<0.000000e+00> : vector<2x128xf32>
      %57 = tpu.matmul %55, %56, %cst_37 {dimension_numbers = #tpu.dot_dimension_numbers<[1], [0], [0], [1], [0, 0, 1, 1], [], []>} : vector<2x32xbf16>, vector<32x128xbf16>, vector<2x128xf32> -> vector<2x128xf32>
      %58 = arith.addf %54, %57 : vector<2x128xf32>
      %c0_38 = arith.constant 0 : index
      %c0_39 = arith.constant 0 : index
      %59 = vector.load %arg11[%c0_38, %c0_39] : memref<1x128xf32, #tpu.memory_space<vmem>>, vector<1x128xf32>
      %60 = vector.broadcast %59 : vector<1x128xf32> to vector<2x128xf32>
      %61 = arith.addf %58, %60 : vector<2x128xf32>
      %62 = vector.extract_strided_slice %61 {offsets = [0, 0], sizes = [2, 32], strides = [1, 1]} : vector<2x128xf32> to vector<2x32xf32>
      %cst_40 = arith.constant 5.000000e-01 : f32
      %63 = vector.broadcast %cst_40 : f32 to vector<2x32xf32>
      %64 = arith.mulf %63, %62 : vector<2x32xf32>
      %65 = math.tanh %64 : vector<2x32xf32>
      %cst_41 = arith.constant 1.000000e+00 : f32
      %66 = vector.broadcast %cst_41 : f32 to vector<2x32xf32>
      %67 = arith.addf %65, %66 : vector<2x32xf32>
      %cst_42 = arith.constant 5.000000e-01 : f32
      %68 = vector.broadcast %cst_42 : f32 to vector<2x32xf32>
      %69 = arith.mulf %68, %67 : vector<2x32xf32>
      %70 = vector.extract_strided_slice %61 {offsets = [0, 32], sizes = [2, 32], strides = [1, 1]} : vector<2x128xf32> to vector<2x32xf32>
      %cst_43 = arith.constant 5.000000e-01 : f32
      %71 = vector.broadcast %cst_43 : f32 to vector<2x32xf32>
      %72 = arith.mulf %71, %70 : vector<2x32xf32>
      %73 = math.tanh %72 : vector<2x32xf32>
      %cst_44 = arith.constant 1.000000e+00 : f32
      %74 = vector.broadcast %cst_44 : f32 to vector<2x32xf32>
      %75 = arith.addf %73, %74 : vector<2x32xf32>
      %cst_45 = arith.constant 5.000000e-01 : f32
      %76 = vector.broadcast %cst_45 : f32 to vector<2x32xf32>
      %77 = arith.mulf %76, %75 : vector<2x32xf32>
      %78 = vector.extract_strided_slice %61 {offsets = [0, 64], sizes = [2, 32], strides = [1, 1]} : vector<2x128xf32> to vector<2x32xf32>
      %79 = math.tanh %78 : vector<2x32xf32>
      %80 = vector.extract_strided_slice %61 {offsets = [0, 96], sizes = [2, 32], strides = [1, 1]} : vector<2x128xf32> to vector<2x32xf32>
      %cst_46 = arith.constant 5.000000e-01 : f32
      %81 = vector.broadcast %cst_46 : f32 to vector<2x32xf32>
      %82 = arith.mulf %81, %80 : vector<2x32xf32>
      %83 = math.tanh %82 : vector<2x32xf32>
      %cst_47 = arith.constant 1.000000e+00 : f32
      %84 = vector.broadcast %cst_47 : f32 to vector<2x32xf32>
      %85 = arith.addf %83, %84 : vector<2x32xf32>
      %cst_48 = arith.constant 5.000000e-01 : f32
      %86 = vector.broadcast %cst_48 : f32 to vector<2x32xf32>
      %87 = arith.mulf %86, %85 : vector<2x32xf32>
      %c0_49 = arith.constant 0 : index
      %c0_50 = arith.constant 0 : index
      %88 = vector.load %arg3[%c0_49, %c0_50] : memref<2x32xf32, #tpu.memory_space<vmem>>, vector<2x32xf32>
      %89 = arith.mulf %77, %88 : vector<2x32xf32>
      %90 = arith.mulf %69, %79 : vector<2x32xf32>
      %91 = arith.addf %89, %90 : vector<2x32xf32>
      %92 = math.tanh %91 : vector<2x32xf32>
      %93 = arith.mulf %87, %92 : vector<2x32xf32>
      %94 = tpu.concatenate %93, %51 in 1 : vector<2x32xf32>, vector<2x32xf32> -> vector<2x64xf32>
      %95 = arith.truncf %94 : vector<2x64xf32> to vector<2x64xbf16>
      %c0_51 = arith.constant 0 : index
      %c0_52 = arith.constant 0 : index
      %96 = vector.load %arg12[%c0_51, %c0_52] : memref<64x5xbf16, #tpu.memory_space<vmem>>, vector<64x5xbf16>
      %cst_53 = arith.constant dense<0.000000e+00> : vector<2x5xf32>
      %97 = tpu.matmul %95, %96, %cst_53 {dimension_numbers = #tpu.dot_dimension_numbers<[1], [0], [0], [1], [0, 0, 1, 1], [], []>} : vector<2x64xbf16>, vector<64x5xbf16>, vector<2x5xf32> -> vector<2x5xf32>
      %c0_54 = arith.constant 0 : index
      %c0_55 = arith.constant 0 : index
      %98 = vector.load %arg13[%c0_54, %c0_55] : memref<1x5xf32, #tpu.memory_space<vmem>>, vector<1x5xf32>
      %99 = vector.broadcast %98 : vector<1x5xf32> to vector<2x5xf32>
      %100 = arith.addf %97, %99 : vector<2x5xf32>
      %cst_56 = arith.constant 0.000000e+00 : f32
      %101 = vector.broadcast %cst_56 : f32 to vector<2x59xf32>
      %102 = tpu.concatenate %93, %91, %100, %101 in 1 : vector<2x32xf32>, vector<2x32xf32>, vector<2x5xf32>, vector<2x59xf32> -> vector<2x128xf32>
      %c0_57 = arith.constant 0 : index
      %c0_58 = arith.constant 0 : index
      %103 = vector.load %arg14[%c0_57, %c0_58] : memref<2x128xf32, #tpu.memory_space<vmem>>, vector<2x128xf32>
      tpu.vector_store %arg14[%c0_57, %c0_58], %102 {strides = array<i32>} : memref<2x128xf32, #tpu.memory_space<vmem>>, vector<2x128xf32>,
    } else {
    }
    return
  }
  func.func @transform_0(%arg0: i32) -> (i32, i32) {
    %c0_i32 = arith.constant 0 : i32
    %c0_i32_0 = arith.constant 0 : i32
    %c0_i32_1 = arith.constant 0 : i32
    return %c0_i32, %c0_i32_0 : i32, i32
  }
  func.func @transform_1(%arg0: i32) -> (i32, i32) {
    %c0_i32 = arith.constant 0 : i32
    %c0_i32_0 = arith.constant 0 : i32
    %c0_i32_1 = arith.constant 0 : i32
    return %c0_i32, %c0_i32_0 : i32, i32
  }
  func.func @transform_2(%arg0: i32) -> (i32, i32) {
    %c0_i32 = arith.constant 0 : i32
    %c0_i32_0 = arith.constant 0 : i32
    %c0_i32_1 = arith.constant 0 : i32
    return %c0_i32, %c0_i32_0 : i32, i32
  }
  func.func @transform_3(%arg0: i32) -> (i32, i32, i32) {
    %c0_i32 = arith.constant 0 : i32
    %c0_i32_0 = arith.constant 0 : i32
    %c0_i32_1 = arith.constant 0 : i32
    return %c0_i32, %arg0, %c0_i32_0 : i32, i32, i32
  }
  func.func @transform_4(%arg0: i32) -> (i32, i32) {
    %c0_i32 = arith.constant 0 : i32
    %c0_i32_0 = arith.constant 0 : i32
    %c0_i32_1 = arith.constant 0 : i32
    return %c0_i32, %c0_i32_0 : i32, i32
  }
  func.func @transform_5(%arg0: i32) -> (i32, i32) {
    %c0_i32 = arith.constant 0 : i32
    %c0_i32_0 = arith.constant 0 : i32
    %c0_i32_1 = arith.constant 0 : i32
    return %c0_i32, %c0_i32_0 : i32, i32
  }
  func.func @transform_6(%arg0: i32) -> (i32, i32) {
    %c0_i32 = arith.constant 0 : i32
    %c0_i32_0 = arith.constant 0 : i32
    %c0_i32_1 = arith.constant 0 : i32
    return %c0_i32, %c0_i32_0 : i32, i32
  }
  func.func @transform_7(%arg0: i32) -> (i32, i32) {
    %c0_i32 = arith.constant 0 : i32
    %c0_i32_0 = arith.constant 0 : i32
    %c0_i32_1 = arith.constant 0 : i32
    return %c0_i32, %c0_i32_0 : i32, i32
  }
  func.func @transform_8(%arg0: i32) -> (i32, i32) {
    %c0_i32 = arith.constant 0 : i32
    %c0_i32_0 = arith.constant 0 : i32
    %c0_i32_1 = arith.constant 0 : i32
    return %c0_i32, %c0_i32_0 : i32, i32
  }
  func.func @transform_9(%arg0: i32) -> (i32, i32) {
    %c0_i32 = arith.constant 0 : i32
    %c0_i32_0 = arith.constant 0 : i32
    %c0_i32_1 = arith.constant 0 : i32
    return %c0_i32, %c0_i32_0 : i32, i32
  }
  func.func @transform_10(%arg0: i32) -> (i32, i32) {
    %c0_i32 = arith.constant 0 : i32
    %c0_i32_0 = arith.constant 0 : i32
    %c0_i32_1 = arith.constant 0 : i32
    return %c0_i32, %c0_i32_0 : i32, i32
  }
  func.func @transform_11(%arg0: i32) -> (i32, i32) {
    %c0_i32 = arith.constant 0 : i32
    %c0_i32_0 = arith.constant 0 : i32
    %c0_i32_1 = arith.constant 0 : i32
    return %c0_i32, %c0_i32_0 : i32, i32
  }
  func.func @transform_12(%arg0: i32) -> (i32, i32) {
    %c0_i32 = arith.constant 0 : i32
    %c0_i32_0 = arith.constant 0 : i32
    %c0_i32_1 = arith.constant 0 : i32
    return %c0_i32, %c0_i32_0 : i32, i32
  }
  func.func @transform_13(%arg0: i32) -> (i32, i32) {
    %c0_i32 = arith.constant 0 : i32
    %c0_i32_0 = arith.constant 0 : i32
    %c0_i32_1 = arith.constant 0 : i32
    return %c0_i32, %c0_i32_0 : i32, i32
  }
}

</mosaic_0001>

<llo_original>
// kernel: tpu_custom_call.1
$region0: #{tpu_custom_call.1}
  #allocation0 [shape = 'u32[]', space=smem, size = 0x4, offset = 0x4, fixed_abs, tag = 'smem constant byte address 0x4 - core index']
  #allocation1 [shape = 'u32[144,128]{1,0:T(1,128)}', space=vmem, size = 0x12000, scoped, tag = 'internal scratch']
  #allocation2 [shape = 'f32[2,32]{1,0:T(2,128)}', space=vmem, size = 0x400, scoped, tag = 'scratch operand']
  #allocation3 [shape = 'f32[2,1]{1,0:T(2,128)}', space=vmem, size = 0x400, scoped, tag = 'scratch operand']
  #allocation4 [shape = 'f32[2,1]{1,0:T(2,128)}', space=vmem, size = 0x400, scoped, tag = 'scratch operand']
  #allocation5 [shape = 'f32[2,32]{1,0:T(2,128)}', space=vmem, size = 0x400, scoped, tag = 'scratch operand']
  #allocation28 [shape = 's32[]', space=sflag, size = 0x4, offset = 0, fixed_abs, tag = 'sflag constant byte address 0x0 - dummy sync flag']
  %s0 = inlined_call_operand.hbm [shape: bf16[2,48], index: 0, kind: input, shape index: {}]
  %s1 = inlined_call_operand.hbm [shape: bf16[2,32], index: 1, kind: input, shape index: {}]
  %s2 = inlined_call_operand.hbm [shape: f32[2,32], index: 2, kind: input, shape index: {}]
  %s3 = inlined_call_operand.hbm [shape: bf16[2,32,32], index: 3, kind: input, shape index: {}]
  %s4 = inlined_call_operand.hbm [shape: bf16[32,32], index: 4, kind: input, shape index: {}]
  %s5 = inlined_call_operand.hbm [shape: bf16[32,32], index: 5, kind: input, shape index: {}]
  %s6 = inlined_call_operand.hbm [shape: f32[1,32], index: 6, kind: input, shape index: {}]
  %s7 = inlined_call_operand.hbm [shape: f32[1,32], index: 7, kind: input, shape index: {}]
  %s8 = inlined_call_operand.hbm [shape: bf16[48,128], index: 8, kind: input, shape index: {}]
  %s9 = inlined_call_operand.hbm [shape: bf16[32,128], index: 9, kind: input, shape index: {}]
  %s10 = inlined_call_operand.hbm [shape: f32[1,128], index: 10, kind: input, shape index: {}]
  %s11 = inlined_call_operand.hbm [shape: bf16[64,5], index: 11, kind: input, shape index: {}]
  %s12 = inlined_call_operand.hbm [shape: f32[1,5], index: 12, kind: input, shape index: {}]
  %s13 = inlined_call_operand.hbm [shape: f32[2,128], index: 13, kind: output, shape index: {}]
  %s14 = sld [smem:[#allocation0]]
  $region145: #{tpu_custom_call.1} parent=0
    _
  %s16 = ssub.s32 1, %s14
  %s17 = scalar_select 0, %s16, %s14
  $region1: #{tpu_custom_call.1} parent=0
    #allocation6 [shape = 'u8[512]{0}', space=vmem, size = 0x400, scoped, tag = 'input window, operand 0, single buffered']
    #allocation7 [shape = 's32[2]{0}', space=sflag, size = 0x8, scoped, tag = 'scoped memory for tpu_custom_call.1']
    #allocation8 [shape = 's32[2]{0}', space=sflag, size = 0x8, scoped, tag = 'scoped memory for tpu_custom_call.1']
    #allocation9 [shape = 'u8[512]{0}', space=vmem, size = 0x400, scoped, tag = 'input window, operand 1, single buffered']
    #allocation10 [shape = 's32[1]{0}', space=sflag, size = 0x4, scoped, tag = 'scoped memory for tpu_custom_call.1']
    #allocation11 [shape = 'u8[1024]{0}', space=vmem, size = 0x400, scoped, tag = 'input window, operand 2, single buffered']
    #allocation12 [shape = 'u8[16384]{0}', space=vmem, size = 0x4000, scoped, tag = 'input window, operand 3']
    #allocation13 [shape = 's32[2]{0}', space=sflag, size = 0x8, scoped, tag = 'scoped memory for tpu_custom_call.1']
    #allocation14 [shape = 'u8[8192]{0}', space=vmem, size = 0x2000, scoped, tag = 'input window, operand 4, single buffered']
    #allocation15 [shape = 'u8[8192]{0}', space=vmem, size = 0x2000, scoped, tag = 'input window, operand 5, single buffered']
    #allocation16 [shape = 's32[1]{0}', space=sflag, size = 0x4, scoped, tag = 'scoped memory for tpu_custom_call.1']
    #allocation17 [shape = 'u8[512]{0}', space=vmem, size = 0x400, scoped, tag = 'input window, operand 6, single buffered']
    #allocation18 [shape = 'u8[512]{0}', space=vmem, size = 0x400, scoped, tag = 'input window, operand 7, single buffered']
    #allocation19 [shape = 's32[1]{0}', space=sflag, size = 0x4, scoped, tag = 'scoped memory for tpu_custom_call.1']
    #allocation20 [shape = 'u8[12288]{0}', space=vmem, size = 0x3000, scoped, tag = 'input window, operand 8, single buffered']
    #allocation21 [shape = 'u8[8192]{0}', space=vmem, size = 0x2000, scoped, tag = 'input window, operand 9, single buffered']
    #allocation22 [shape = 's32[1]{0}', space=sflag, size = 0x4, scoped, tag = 'scoped memory for tpu_custom_call.1']
    #allocation23 [shape = 'u8[512]{0}', space=vmem, size = 0x400, scoped, tag = 'input window, operand 10, single buffered']
    #allocation24 [shape = 'u8[16384]{0}', space=vmem, size = 0x4000, scoped, tag = 'input window, operand 11, single buffered']
    #allocation25 [shape = 's32[1]{0}', space=sflag, size = 0x4, scoped, tag = 'scoped memory for tpu_custom_call.1']
    #allocation26 [shape = 'u8[512]{0}', space=vmem, size = 0x400, scoped, tag = 'input window, operand 12, single buffered']
    #allocation27 [shape = 'u8[1024]{0}', space=vmem, size = 0x400, scoped, tag = 'output window, operand 0, single buffered']
    %18 = vsyncpa [#allocation7], 0
    %19 = vsyncpa [#allocation10], 0
    %20 = vsyncpa [#allocation13], 0
    %s21 = scalar_lea.sflag [#allocation13], 1
    %22 = vsyncpa %s21, 0
    %23 = vsyncpa [#allocation16], 0
    %24 = vsyncpa [#allocation19], 0
    %25 = vsyncpa [#allocation22], 0
    %26 = vsyncpa [#allocation25], 0
    %27 = vsyncpa [#allocation8], 0
    loop: start=0, step=1, limit=4
    $region2: #{tpu_custom_call.1} parent=1 // loop_pre_header
      _
    $region3: #{tpu_custom_call.1} parent=1 // loop_header
      %s29 = sphi 0, %s33
      %p30 = scmp.ge.s32.totalorder %s29, 4
      %s37 = sphi 0, %s37
      %s39 = sphi 0, %s37
      %s40 = sphi 0, %s39
      %s54 = sphi 0, %s40
      %s58 = sphi 0, %s58
      %s60 = sphi 0, %s58
      %s61 = sphi 0, %s60
      %s75 = sphi 0, %s61
      %s79 = sphi 0, %s79
      %s81 = sphi 0, %s79
      %s82 = sphi 0, %s81
      %s96 = sphi 0, %s82
      %s102 = sphi 0, %s104
      %s105 = sphi 0, %s102
      %s106 = sphi 0, %s105
      %s122 = sphi 0, %s106
      %s126 = sphi 0, %s126
      %s128 = sphi 0, %s126
      %s129 = sphi 0, %s128
      %s143 = sphi 0, %s129
      %s147 = sphi 0, %s147
      %s149 = sphi 0, %s147
      %s150 = sphi 0, %s149
      %s164 = sphi 0, %s150
      %s168 = sphi 0, %s168
      %s170 = sphi 0, %s168
      %s171 = sphi 0, %s170
      %s185 = sphi 0, %s171
      %s189 = sphi 0, %s189
      %s191 = sphi 0, %s189
      %s192 = sphi 0, %s191
      %s206 = sphi 0, %s192
      %s210 = sphi 0, %s210
      %s212 = sphi 0, %s210
      %s213 = sphi 0, %s212
      %s227 = sphi 0, %s213
      %s231 = sphi 0, %s231
      %s233 = sphi 0, %s231
      %s234 = sphi 0, %s233
      %s248 = sphi 0, %s234
      %s252 = sphi 0, %s252
      %s254 = sphi 0, %s252
      %s255 = sphi 0, %s254
      %s269 = sphi 0, %s255
      %s273 = sphi 0, %s273
      %s275 = sphi 0, %s273
      %s276 = sphi 0, %s275
      %s290 = sphi 0, %s276
      %s294 = sphi 0, %s294
      %s296 = sphi 0, %s294
      %s297 = sphi 0, %s296
      %s311 = sphi 0, %s297
      %s315 = sphi 0, %s315
      %s317 = sphi 0, %s315
      %s318 = sphi 0, %s317
      %s332 = sphi 0, %s318
    $region4: #{tpu_custom_call.1} parent=1 // loop_header_branch
      %32 = sbr.rel (%p30) target = $region8
    $region5: #{tpu_custom_call.1} parent=1 // loop_body
      %s34 = ssub.s32 %s29, 1
      %s35 = ssub.s32 %s29, 2
      %s36 = sadd.s32 %s29, 1
      %s38 = sadd.s32 %s37, 1
      %p41 = scmp.eq.s32.totalorder %s29, 1
      %p42 = scmp.ne.s32.totalorder %s37, %s39
      %p43 = scmp.eq.s32.totalorder %s29, 0
      %p44 = por %p42, %p43
      %p45 = scmp.ne.s32.totalorder %s37, %s39
      %p46 = scmp.eq.s32.totalorder %s34, 1
      %p47 = por %p45, %p46
      %p48 = scmp.ne.s32.totalorder %s39, %s40
      %p49 = scmp.eq.s32.totalorder %s34, 0
      %p50 = por %p48, %p49
      %p51 = scmp.ne.s32.totalorder %s39, %s40
      %p52 = scmp.eq.s32.totalorder %s35, 1
      %p53 = por %p51, %p52
      %p55 = scmp.ne.s32.totalorder %s40, %s54
      %p56 = scmp.eq.s32.totalorder %s35, 0
      %p57 = por %p55, %p56
      %s59 = sadd.s32 %s58, 1
      %p62 = scmp.eq.s32.totalorder %s29, 1
      %p63 = scmp.ne.s32.totalorder %s58, %s60
      %p64 = scmp.eq.s32.totalorder %s29, 0
      %p65 = por %p63, %p64
      %p66 = scmp.ne.s32.totalorder %s58, %s60
      %p67 = scmp.eq.s32.totalorder %s34, 1
      %p68 = por %p66, %p67
      %p69 = scmp.ne.s32.totalorder %s60, %s61
      %p70 = scmp.eq.s32.totalorder %s34, 0
      %p71 = por %p69, %p70
      %p72 = scmp.ne.s32.totalorder %s60, %s61
      %p73 = scmp.eq.s32.totalorder %s35, 1
      %p74 = por %p72, %p73
      %p76 = scmp.ne.s32.totalorder %s61, %s75
      %p77 = scmp.eq.s32.totalorder %s35, 0
      %p78 = por %p76, %p77
      %s80 = sadd.s32 %s79, 1
      %p83 = scmp.eq.s32.totalorder %s29, 1
      %p84 = scmp.ne.s32.totalorder %s79, %s81
      %p85 = scmp.eq.s32.totalorder %s29, 0
      %p86 = por %p84, %p85
      %p87 = scmp.ne.s32.totalorder %s79, %s81
      %p88 = scmp.eq.s32.totalorder %s34, 1
      %p89 = por %p87, %p88
      %p90 = scmp.ne.s32.totalorder %s81, %s82
      %p91 = scmp.eq.s32.totalorder %s34, 0
      %p92 = por %p90, %p91
      %p93 = scmp.ne.s32.totalorder %s81, %s82
      %p94 = scmp.eq.s32.totalorder %s35, 1
      %p95 = por %p93, %p94
      %p97 = scmp.ne.s32.totalorder %s82, %s96
      %p98 = scmp.eq.s32.totalorder %s35, 0
      %p99 = por %p97, %p98
      %s100 = ssub.s32 %s29, %s36
      %p101 = scmp.eq.s32.totalorder %s100, 0
      %s103 = sadd.s32 %s102, 1
      %s104 = scalar_select %p101, %s102, %s103
      %p107 = pneg %p101
      %p108 = scmp.eq.s32.totalorder %s29, 1
      %p109 = por %p107, %p108
      %p110 = scmp.ne.s32.totalorder %s102, %s105
      %p111 = scmp.eq.s32.totalorder %s29, 0
      %p112 = por %p110, %p111
      %p113 = scmp.ne.s32.totalorder %s102, %s105
      %p114 = scmp.eq.s32.totalorder %s34, 1
      %p115 = por %p113, %p114
      %p116 = scmp.ne.s32.totalorder %s105, %s106
      %p117 = scmp.eq.s32.totalorder %s34, 0
      %p118 = por %p116, %p117
      %p119 = scmp.ne.s32.totalorder %s105, %s106
      %p120 = scmp.eq.s32.totalorder %s35, 1
      %p121 = por %p119, %p120
      %p123 = scmp.ne.s32.totalorder %s106, %s122
      %p124 = scmp.eq.s32.totalorder %s35, 0
      %p125 = por %p123, %p124
      %s127 = sadd.s32 %s126, 1
      %p130 = scmp.eq.s32.totalorder %s29, 1
      %p131 = scmp.ne.s32.totalorder %s126, %s128
      %p132 = scmp.eq.s32.totalorder %s29, 0
      %p133 = por %p131, %p132
      %p134 = scmp.ne.s32.totalorder %s126, %s128
      %p135 = scmp.eq.s32.totalorder %s34, 1
      %p136 = por %p134, %p135
      %p137 = scmp.ne.s32.totalorder %s128, %s129
      %p138 = scmp.eq.s32.totalorder %s34, 0
      %p139 = por %p137, %p138
      %p140 = scmp.ne.s32.totalorder %s128, %s129
      %p141 = scmp.eq.s32.totalorder %s35, 1
      %p142 = por %p140, %p141
      %p144 = scmp.ne.s32.totalorder %s129, %s143
      %p145 = scmp.eq.s32.totalorder %s35, 0
      %p146 = por %p144, %p145
      %s148 = sadd.s32 %s147, 1
      %p151 = scmp.eq.s32.totalorder %s29, 1
      %p152 = scmp.ne.s32.totalorder %s147, %s149
      %p153 = scmp.eq.s32.totalorder %s29, 0
      %p154 = por %p152, %p153
      %p155 = scmp.ne.s32.totalorder %s147, %s149
      %p156 = scmp.eq.s32.totalorder %s34, 1
      %p157 = por %p155, %p156
      %p158 = scmp.ne.s32.totalorder %s149, %s150
      %p159 = scmp.eq.s32.totalorder %s34, 0
      %p160 = por %p158, %p159
      %p161 = scmp.ne.s32.totalorder %s149, %s150
      %p162 = scmp.eq.s32.totalorder %s35, 1
      %p163 = por %p161, %p162
      %p165 = scmp.ne.s32.totalorder %s150, %s164
      %p166 = scmp.eq.s32.totalorder %s35, 0
      %p167 = por %p165, %p166
      %s169 = sadd.s32 %s168, 1
      %p172 = scmp.eq.s32.totalorder %s29, 1
      %p173 = scmp.ne.s32.totalorder %s168, %s170
      %p174 = scmp.eq.s32.totalorder %s29, 0
      %p175 = por %p173, %p174
      %p176 = scmp.ne.s32.totalorder %s168, %s170
      %p177 = scmp.eq.s32.totalorder %s34, 1
      %p178 = por %p176, %p177
      %p179 = scmp.ne.s32.totalorder %s170, %s171
      %p180 = scmp.eq.s32.totalorder %s34, 0
      %p181 = por %p179, %p180
      %p182 = scmp.ne.s32.totalorder %s170, %s171
      %p183 = scmp.eq.s32.totalorder %s35, 1
      %p184 = por %p182, %p183
      %p186 = scmp.ne.s32.totalorder %s171, %s185
      %p187 = scmp.eq.s32.totalorder %s35, 0
      %p188 = por %p186, %p187
      %s190 = sadd.s32 %s189, 1
      %p193 = scmp.eq.s32.totalorder %s29, 1
      %p194 = scmp.ne.s32.totalorder %s189, %s191
      %p195 = scmp.eq.s32.totalorder %s29, 0
      %p196 = por %p194, %p195
      %p197 = scmp.ne.s32.totalorder %s189, %s191
      %p198 = scmp.eq.s32.totalorder %s34, 1
      %p199 = por %p197, %p198
      %p200 = scmp.ne.s32.totalorder %s191, %s192
      %p201 = scmp.eq.s32.totalorder %s34, 0
      %p202 = por %p200, %p201
      %p203 = scmp.ne.s32.totalorder %s191, %s192
      %p204 = scmp.eq.s32.totalorder %s35, 1
      %p205 = por %p203, %p204
      %p207 = scmp.ne.s32.totalorder %s192, %s206
      %p208 = scmp.eq.s32.totalorder %s35, 0
      %p209 = por %p207, %p208
      %s211 = sadd.s32 %s210, 1
      %p214 = scmp.eq.s32.totalorder %s29, 1
      %p215 = scmp.ne.s32.totalorder %s210, %s212
      %p216 = scmp.eq.s32.totalorder %s29, 0
      %p217 = por %p215, %p216
      %p218 = scmp.ne.s32.totalorder %s210, %s212
      %p219 = scmp.eq.s32.totalorder %s34, 1
      %p220 = por %p218, %p219
      %p221 = scmp.ne.s32.totalorder %s212, %s213
      %p222 = scmp.eq.s32.totalorder %s34, 0
      %p223 = por %p221, %p222
      %p224 = scmp.ne.s32.totalorder %s212, %s213
      %p225 = scmp.eq.s32.totalorder %s35, 1
      %p226 = por %p224, %p225
      %p228 = scmp.ne.s32.totalorder %s213, %s227
      %p229 = scmp.eq.s32.totalorder %s35, 0
      %p230 = por %p228, %p229
      %s232 = sadd.s32 %s231, 1
      %p235 = scmp.eq.s32.totalorder %s29, 1
      %p236 = scmp.ne.s32.totalorder %s231, %s233
      %p237 = scmp.eq.s32.totalorder %s29, 0
      %p238 = por %p236, %p237
      %p239 = scmp.ne.s32.totalorder %s231, %s233
      %p240 = scmp.eq.s32.totalorder %s34, 1
      %p241 = por %p239, %p240
      %p242 = scmp.ne.s32.totalorder %s233, %s234
      %p243 = scmp.eq.s32.totalorder %s34, 0
      %p244 = por %p242, %p243
      %p245 = scmp.ne.s32.totalorder %s233, %s234
      %p246 = scmp.eq.s32.totalorder %s35, 1
      %p247 = por %p245, %p246
      %p249 = scmp.ne.s32.totalorder %s234, %s248
      %p250 = scmp.eq.s32.totalorder %s35, 0
      %p251 = por %p249, %p250
      %s253 = sadd.s32 %s252, 1
      %p256 = scmp.eq.s32.totalorder %s29, 1
      %p257 = scmp.ne.s32.totalorder %s252, %s254
      %p258 = scmp.eq.s32.totalorder %s29, 0
      %p259 = por %p257, %p258
      %p260 = scmp.ne.s32.totalorder %s252, %s254
      %p261 = scmp.eq.s32.totalorder %s34, 1
      %p262 = por %p260, %p261
      %p263 = scmp.ne.s32.totalorder %s254, %s255
      %p264 = scmp.eq.s32.totalorder %s34, 0
      %p265 = por %p263, %p264
      %p266 = scmp.ne.s32.totalorder %s254, %s255
      %p267 = scmp.eq.s32.totalorder %s35, 1
      %p268 = por %p266, %p267
      %p270 = scmp.ne.s32.totalorder %s255, %s269
      %p271 = scmp.eq.s32.totalorder %s35, 0
      %p272 = por %p270, %p271
      %s274 = sadd.s32 %s273, 1
      %p277 = scmp.eq.s32.totalorder %s29, 1
      %p278 = scmp.ne.s32.totalorder %s273, %s275
      %p279 = scmp.eq.s32.totalorder %s29, 0
      %p280 = por %p278, %p279
      %p281 = scmp.ne.s32.totalorder %s273, %s275
      %p282 = scmp.eq.s32.totalorder %s34, 1
      %p283 = por %p281, %p282
      %p284 = scmp.ne.s32.totalorder %s275, %s276
      %p285 = scmp.eq.s32.totalorder %s34, 0
      %p286 = por %p284, %p285
      %p287 = scmp.ne.s32.totalorder %s275, %s276
      %p288 = scmp.eq.s32.totalorder %s35, 1
      %p289 = por %p287, %p288
      %p291 = scmp.ne.s32.totalorder %s276, %s290
      %p292 = scmp.eq.s32.totalorder %s35, 0
      %p293 = por %p291, %p292
      %s295 = sadd.s32 %s294, 1
      %p298 = scmp.eq.s32.totalorder %s29, 1
      %p299 = scmp.ne.s32.totalorder %s294, %s296
      %p300 = scmp.eq.s32.totalorder %s29, 0
      %p301 = por %p299, %p300
      %p302 = scmp.ne.s32.totalorder %s294, %s296
      %p303 = scmp.eq.s32.totalorder %s34, 1
      %p304 = por %p302, %p303
      %p305 = scmp.ne.s32.totalorder %s296, %s297
      %p306 = scmp.eq.s32.totalorder %s34, 0
      %p307 = por %p305, %p306
      %p308 = scmp.ne.s32.totalorder %s296, %s297
      %p309 = scmp.eq.s32.totalorder %s35, 1
      %p310 = por %p308, %p309
      %p312 = scmp.ne.s32.totalorder %s297, %s311
      %p313 = scmp.eq.s32.totalorder %s35, 0
      %p314 = por %p312, %p313
      %s316 = sadd.s32 %s315, 1
      %p319 = scmp.eq.s32.totalorder %s29, 1
      %p320 = scmp.ne.s32.totalorder %s315, %s317
      %p321 = scmp.eq.s32.totalorder %s29, 0
      %p322 = por %p320, %p321
      %p323 = scmp.ne.s32.totalorder %s315, %s317
      %p324 = scmp.eq.s32.totalorder %s34, 1
      %p325 = por %p323, %p324
      %p326 = scmp.ne.s32.totalorder %s317, %s318
      %p327 = scmp.eq.s32.totalorder %s34, 0
      %p328 = por %p326, %p327
      %p329 = scmp.ne.s32.totalorder %s317, %s318
      %p330 = scmp.eq.s32.totalorder %s35, 1
      %p331 = por %p329, %p330
      %p333 = scmp.ne.s32.totalorder %s318, %s332
      %p334 = scmp.eq.s32.totalorder %s35, 0
      %p335 = por %p333, %p334
      %p336 = scmp.le.s32.totalorder 1, %s29
      %p337 = scmp.lt.s32.totalorder %s29, 3
      %p338 = pnand %p336, %p337
      %p339 = pneg %p338
      // Predicated region
      $region9: #{tpu_custom_call.1} parent=5 // pred_check
        _
      $region10: #{tpu_custom_call.1} parent=5 // pred_check_branch
        %341 = sbr.rel (%p338) target = $region12
      $region11: #{tpu_custom_call.1} parent=5 // pred_region
        %s342 = ssub.s32 %s29, 1
        // Predicated region
        $region13: #{tpu_custom_call.1} parent=11 // pred_check
          %p343 = pneg %p50
        $region14: #{tpu_custom_call.1} parent=11 // pred_check_branch
          %345 = sbr.rel (%p343) target = $region16
        $region15: #{tpu_custom_call.1} parent=11 // pred_region
          %s347 = ssub.s32 16, 16
          %348 = vsyncadd [#allocation7], %s347
          %s350 = sshll.u32 [#allocation6], 4
          %s351 = int_to_ptr.vmem [resolvable:$true] %s350
          %353 = dma.hbm_to_vmem [thread:$0]  %s0, 16, %s351, [#allocation7]
        $region16: #{tpu_custom_call.1} parent=11 // pred_fallthru
          _
        // Predicated region
        $region17: #{tpu_custom_call.1} parent=11 // pred_check
          %p354 = pneg %p71
        $region18: #{tpu_custom_call.1} parent=11 // pred_check_branch
          %356 = sbr.rel (%p354) target = $region20
        $region19: #{tpu_custom_call.1} parent=11 // pred_region
          %s358 = ssub.s32 16, 16
          %359 = vsyncadd [#allocation10], %s358
          %s361 = sshll.u32 [#allocation9], 4
          %s362 = int_to_ptr.vmem [resolvable:$true] %s361
          %364 = dma.hbm_to_vmem [thread:$0]  %s1, 16, %s362, [#allocation10]
        $region20: #{tpu_custom_call.1} parent=11 // pred_fallthru
          _
        // Predicated region
        $region21: #{tpu_custom_call.1} parent=11 // pred_check
          %p365 = pneg %p92
        $region22: #{tpu_custom_call.1} parent=11 // pred_check_branch
          %367 = sbr.rel (%p365) target = $region24
        $region23: #{tpu_custom_call.1} parent=11 // pred_region
          %s369 = ssub.s32 32, 32
          %370 = vsyncadd [#allocation10], %s369
          %s372 = sshll.u32 [#allocation11], 4
          %s373 = int_to_ptr.vmem [resolvable:$true] %s372
          %375 = dma.hbm_to_vmem [thread:$0]  %s2, 32, %s373, [#allocation10]
        $region24: #{tpu_custom_call.1} parent=11 // pred_fallthru
          _
        // Predicated region
        $region25: #{tpu_custom_call.1} parent=11 // pred_check
          %p376 = pneg %p139
        $region26: #{tpu_custom_call.1} parent=11 // pred_check_branch
          %378 = sbr.rel (%p376) target = $region28
        $region27: #{tpu_custom_call.1} parent=11 // pred_region
          %s380 = ssub.s32 256, 256
          %381 = vsyncadd [#allocation13], %s380
          %s382 = sshll.u32 [#allocation14], 4
          %s383 = int_to_ptr.vmem [resolvable:$true] %s382
          %388 = dma.hbm_to_vmem [thread:$0]  %s4, 256, %s383, [#allocation13], 64, 64, 4
        $region28: #{tpu_custom_call.1} parent=11 // pred_fallthru
          _
        // Predicated region
        $region29: #{tpu_custom_call.1} parent=11 // pred_check
          %p389 = pneg %p160
        $region30: #{tpu_custom_call.1} parent=11 // pred_check_branch
          %391 = sbr.rel (%p389) target = $region32
        $region31: #{tpu_custom_call.1} parent=11 // pred_region
          %s393 = ssub.s32 256, 256
          %394 = vsyncadd [#allocation16], %s393
          %s395 = sshll.u32 [#allocation15], 4
          %s396 = int_to_ptr.vmem [resolvable:$true] %s395
          %401 = dma.hbm_to_vmem [thread:$0]  %s5, 256, %s396, [#allocation16], 64, 64, 4
        $region32: #{tpu_custom_call.1} parent=11 // pred_fallthru
          _
        // Predicated region
        $region33: #{tpu_custom_call.1} parent=11 // pred_check
          %p402 = pneg %p181
        $region34: #{tpu_custom_call.1} parent=11 // pred_check_branch
          %404 = sbr.rel (%p402) target = $region36
        $region35: #{tpu_custom_call.1} parent=11 // pred_region
          %s406 = ssub.s32 16, 16
          %407 = vsyncadd [#allocation16], %s406
          %s409 = sshll.u32 [#allocation17], 4
          %s410 = int_to_ptr.vmem [resolvable:$true] %s409
          %412 = dma.hbm_to_vmem [thread:$0]  %s6, 16, %s410, [#allocation16]
        $region36: #{tpu_custom_call.1} parent=11 // pred_fallthru
          _
        // Predicated region
        $region37: #{tpu_custom_call.1} parent=11 // pred_check
          %p413 = pneg %p202
        $region38: #{tpu_custom_call.1} parent=11 // pred_check_branch
          %415 = sbr.rel (%p413) target = $region40
        $region39: #{tpu_custom_call.1} parent=11 // pred_region
          %s417 = ssub.s32 16, 16
          %418 = vsyncadd [#allocation19], %s417
          %s420 = sshll.u32 [#allocation18], 4
          %s421 = int_to_ptr.vmem [resolvable:$true] %s420
          %423 = dma.hbm_to_vmem [thread:$0]  %s7, 16, %s421, [#allocation19]
        $region40: #{tpu_custom_call.1} parent=11 // pred_fallthru
          _
        // Predicated region
        $region41: #{tpu_custom_call.1} parent=11 // pred_check
          %p424 = pneg %p223
        $region42: #{tpu_custom_call.1} parent=11 // pred_check_branch
          %426 = sbr.rel (%p424) target = $region44
        $region43: #{tpu_custom_call.1} parent=11 // pred_region
          %s428 = ssub.s32 384, 384
          %429 = vsyncadd [#allocation19], %s428
          %s430 = sshll.u32 [#allocation20], 4
          %s431 = int_to_ptr.vmem [resolvable:$true] %s430
          %436 = dma.hbm_to_vmem [thread:$0]  %s8, 384, %s431, [#allocation19], 64, 64, 4
        $region44: #{tpu_custom_call.1} parent=11 // pred_fallthru
          _
        // Predicated region
        $region45: #{tpu_custom_call.1} parent=11 // pred_check
          %p437 = pneg %p244
        $region46: #{tpu_custom_call.1} parent=11 // pred_check_branch
          %439 = sbr.rel (%p437) target = $region48
        $region47: #{tpu_custom_call.1} parent=11 // pred_region
          %s441 = ssub.s32 256, 256
          %442 = vsyncadd [#allocation22], %s441
          %s443 = sshll.u32 [#allocation21], 4
          %s444 = int_to_ptr.vmem [resolvable:$true] %s443
          %449 = dma.hbm_to_vmem [thread:$0]  %s9, 256, %s444, [#allocation22], 64, 64, 4
        $region48: #{tpu_custom_call.1} parent=11 // pred_fallthru
          _
        // Predicated region
        $region49: #{tpu_custom_call.1} parent=11 // pred_check
          %p450 = pneg %p265
        $region50: #{tpu_custom_call.1} parent=11 // pred_check_branch
          %452 = sbr.rel (%p450) target = $region52
        $region51: #{tpu_custom_call.1} parent=11 // pred_region
          %s454 = ssub.s32 16, 16
          %455 = vsyncadd [#allocation22], %s454
          %s457 = sshll.u32 [#allocation23], 4
          %s458 = int_to_ptr.vmem [resolvable:$true] %s457
          %460 = dma.hbm_to_vmem [thread:$0]  %s10, 16, %s458, [#allocation22]
        $region52: #{tpu_custom_call.1} parent=11 // pred_fallthru
          _
        // Predicated region
        $region53: #{tpu_custom_call.1} parent=11 // pred_check
          %p461 = pneg %p286
        $region54: #{tpu_custom_call.1} parent=11 // pred_check_branch
          %463 = sbr.rel (%p461) target = $region56
        $region55: #{tpu_custom_call.1} parent=11 // pred_region
          %s465 = ssub.s32 512, 512
          %466 = vsyncadd [#allocation25], %s465
          %s467 = sshll.u32 [#allocation24], 4
          %s468 = int_to_ptr.vmem [resolvable:$true] %s467
          %473 = dma.hbm_to_vmem [thread:$0]  %s11, 512, %s468, [#allocation25], 64, 64, 4
        $region56: #{tpu_custom_call.1} parent=11 // pred_fallthru
          _
        // Predicated region
        $region57: #{tpu_custom_call.1} parent=11 // pred_check
          %p474 = pneg %p307
        $region58: #{tpu_custom_call.1} parent=11 // pred_check_branch
          %476 = sbr.rel (%p474) target = $region60
        $region59: #{tpu_custom_call.1} parent=11 // pred_region
          %s478 = ssub.s32 16, 16
          %479 = vsyncadd [#allocation25], %s478
          %s481 = sshll.u32 [#allocation26], 4
          %s482 = int_to_ptr.vmem [resolvable:$true] %s481
          %484 = dma.hbm_to_vmem [thread:$0]  %s12, 16, %s482, [#allocation25]
        $region60: #{tpu_custom_call.1} parent=11 // pred_fallthru
          _
      $region12: #{tpu_custom_call.1} parent=5 // pred_fallthru
        _
      %p485 = scmp.lt.s32.totalorder %s29, 2
      // Predicated region
      $region61: #{tpu_custom_call.1} parent=5 // pred_check
        %p486 = pneg %p485
      $region62: #{tpu_custom_call.1} parent=5 // pred_check_branch
        %488 = sbr.rel (%p486) target = $region64
      $region63: #{tpu_custom_call.1} parent=5 // pred_region
        // Predicated region
        $region65: #{tpu_custom_call.1} parent=63 // pred_check
          %p489 = pneg %p112
        $region66: #{tpu_custom_call.1} parent=63 // pred_check_branch
          %491 = sbr.rel (%p489) target = $region68
        $region67: #{tpu_custom_call.1} parent=63 // pred_region
          #allocation29 [shape = 'u32[6]{0}', space=smem, size = 0x18, scoped, tag = 'DMA stride descriptor']
          %s492 = sand.u32 %s29, 1
          %s493 = scalar_lea.sflag [#allocation13], %s492
          %s494 = sand.u32 %s102, 1
          %s495 = smul.addr %s494, 16
          %s496 = scalar_lea.vmem [#allocation12], %s495
          %s497 = smul.u32 2, %s29
          %s499 = ssub.s32 256, 256
          %500 = vsyncadd %s493, %s499
          %s501 = smul.addr %s497, 64
          %s502 = scalar_lea.hbm %s3, %s501
          %s504 = sshll.u32 1, 14
          %s505 = sxor.u32 4294967295, %s504
          %s507 = sld [smem:[#allocation0]]
          %s508 = sadd.s32 2, %s507
          %s510 = sshll.u32 7, 26
          %s511 = sxor.u32 4294967295, %s510
          %s512 = sand.u32 0, %s511
          %s513 = sshll.u32 %s508, 26
          %s514 = sor.u32 %s512, %s513
          %s515 = sshll.u32 %s496, 4
          %s516 = int_to_ptr.vmem [resolvable:$true] %s515
          %522 = sst [smem:[#allocation29]] 256
          %s523 = scalar_lea.smem [#allocation29], 1
          %524 = sst [smem:[%s523]] 128
          %s525 = scalar_lea.smem [#allocation29], 2
          %526 = sst [smem:[%s525]] 2
          %s527 = scalar_lea.smem [#allocation29], 3
          %528 = sst [smem:[%s527]] 64
          %s529 = scalar_lea.smem [#allocation29], 4
          %530 = sst [smem:[%s529]] 64
          %s531 = scalar_lea.smem [#allocation29], 5
          %532 = sst [smem:[%s531]] 4
          %534 = dma.general %s502, 256, %s516, %s493, [#allocation28], [#allocation29], %s514, 0
        $region68: #{tpu_custom_call.1} parent=63 // pred_fallthru
          _
      $region64: #{tpu_custom_call.1} parent=5 // pred_fallthru
        _
      %p535 = scmp.le.s32.totalorder 1, %s29
      %p536 = scmp.lt.s32.totalorder %s29, 3
      %p537 = pnand %p535, %p536
      %p538 = pneg %p537
      // Predicated region
      $region69: #{tpu_custom_call.1} parent=5 // pred_check
        _
      $region70: #{tpu_custom_call.1} parent=5 // pred_check_branch
        %540 = sbr.rel (%p537) target = $region72
      $region71: #{tpu_custom_call.1} parent=5 // pred_region
        %s541 = ssub.s32 %s29, 1
        // Predicated region
        $region73: #{tpu_custom_call.1} parent=71 // pred_check
          %p542 = pneg %p50
        $region74: #{tpu_custom_call.1} parent=71 // pred_check_branch
          %544 = sbr.rel (%p542) target = $region76
        $region75: #{tpu_custom_call.1} parent=71 // pred_region
          %545 = dma.done [#allocation7], 16
        $region76: #{tpu_custom_call.1} parent=71 // pred_fallthru
          _
        // Predicated region
        $region77: #{tpu_custom_call.1} parent=71 // pred_check
          %p546 = pneg %p71
        $region78: #{tpu_custom_call.1} parent=71 // pred_check_branch
          %548 = sbr.rel (%p546) target = $region80
        $region79: #{tpu_custom_call.1} parent=71 // pred_region
          %549 = dma.done [#allocation10], 16
        $region80: #{tpu_custom_call.1} parent=71 // pred_fallthru
          _
        // Predicated region
        $region81: #{tpu_custom_call.1} parent=71 // pred_check
          %p550 = pneg %p92
        $region82: #{tpu_custom_call.1} parent=71 // pred_check_branch
          %552 = sbr.rel (%p550) target = $region84
        $region83: #{tpu_custom_call.1} parent=71 // pred_region
          %553 = dma.done [#allocation10], 32
        $region84: #{tpu_custom_call.1} parent=71 // pred_fallthru
          _
        %s554 = sand.u32 %s34, 1
        %s555 = scalar_lea.sflag [#allocation13], %s554
        %s556 = sand.u32 %s105, 1
        %s557 = smul.addr %s556, 16
        %s558 = scalar_lea.vmem [#allocation12], %s557
        // Predicated region
        $region85: #{tpu_custom_call.1} parent=71 // pred_check
          %p559 = pneg %p118
        $region86: #{tpu_custom_call.1} parent=71 // pred_check_branch
          %561 = sbr.rel (%p559) target = $region88
        $region87: #{tpu_custom_call.1} parent=71 // pred_region
          %562 = dma.done %s555, 256
        $region88: #{tpu_custom_call.1} parent=71 // pred_fallthru
          _
        // Predicated region
        $region89: #{tpu_custom_call.1} parent=71 // pred_check
          %p563 = pneg %p139
        $region90: #{tpu_custom_call.1} parent=71 // pred_check_branch
          %565 = sbr.rel (%p563) target = $region92
        $region91: #{tpu_custom_call.1} parent=71 // pred_region
          %566 = dma.done [#allocation13], 256
        $region92: #{tpu_custom_call.1} parent=71 // pred_fallthru
          _
        // Predicated region
        $region93: #{tpu_custom_call.1} parent=71 // pred_check
          %p567 = pneg %p160
        $region94: #{tpu_custom_call.1} parent=71 // pred_check_branch
          %569 = sbr.rel (%p567) target = $region96
        $region95: #{tpu_custom_call.1} parent=71 // pred_region
          %570 = dma.done [#allocation16], 256
        $region96: #{tpu_custom_call.1} parent=71 // pred_fallthru
          _
        // Predicated region
        $region97: #{tpu_custom_call.1} parent=71 // pred_check
          %p571 = pneg %p181
        $region98: #{tpu_custom_call.1} parent=71 // pred_check_branch
          %573 = sbr.rel (%p571) target = $region100
        $region99: #{tpu_custom_call.1} parent=71 // pred_region
          %574 = dma.done [#allocation16], 16
        $region100: #{tpu_custom_call.1} parent=71 // pred_fallthru
          _
        // Predicated region
        $region101: #{tpu_custom_call.1} parent=71 // pred_check
          %p575 = pneg %p202
        $region102: #{tpu_custom_call.1} parent=71 // pred_check_branch
          %577 = sbr.rel (%p575) target = $region104
        $region103: #{tpu_custom_call.1} parent=71 // pred_region
          %578 = dma.done [#allocation19], 16
        $region104: #{tpu_custom_call.1} parent=71 // pred_fallthru
          _
        // Predicated region
        $region105: #{tpu_custom_call.1} parent=71 // pred_check
          %p579 = pneg %p223
        $region106: #{tpu_custom_call.1} parent=71 // pred_check_branch
          %581 = sbr.rel (%p579) target = $region108
        $region107: #{tpu_custom_call.1} parent=71 // pred_region
          %582 = dma.done [#allocation19], 384
        $region108: #{tpu_custom_call.1} parent=71 // pred_fallthru
          _
        // Predicated region
        $region109: #{tpu_custom_call.1} parent=71 // pred_check
          %p583 = pneg %p244
        $region110: #{tpu_custom_call.1} parent=71 // pred_check_branch
          %585 = sbr.rel (%p583) target = $region112
        $region111: #{tpu_custom_call.1} parent=71 // pred_region
          %586 = dma.done [#allocation22], 256
        $region112: #{tpu_custom_call.1} parent=71 // pred_fallthru
          _
        // Predicated region
        $region113: #{tpu_custom_call.1} parent=71 // pred_check
          %p587 = pneg %p265
        $region114: #{tpu_custom_call.1} parent=71 // pred_check_branch
          %589 = sbr.rel (%p587) target = $region116
        $region115: #{tpu_custom_call.1} parent=71 // pred_region
          %590 = dma.done [#allocation22], 16
        $region116: #{tpu_custom_call.1} parent=71 // pred_fallthru
          _
        // Predicated region
        $region117: #{tpu_custom_call.1} parent=71 // pred_check
          %p591 = pneg %p286
        $region118: #{tpu_custom_call.1} parent=71 // pred_check_branch
          %593 = sbr.rel (%p591) target = $region120
        $region119: #{tpu_custom_call.1} parent=71 // pred_region
          %594 = dma.done [#allocation25], 512
        $region120: #{tpu_custom_call.1} parent=71 // pred_fallthru
          _
        // Predicated region
        $region121: #{tpu_custom_call.1} parent=71 // pred_check
          %p595 = pneg %p307
        $region122: #{tpu_custom_call.1} parent=71 // pred_check_branch
          %597 = sbr.rel (%p595) target = $region124
        $region123: #{tpu_custom_call.1} parent=71 // pred_region
          %598 = dma.done [#allocation25], 16
        $region124: #{tpu_custom_call.1} parent=71 // pred_fallthru
          _
        %p599 = pneg %p50
        %p600 = pneg %p47
        %p601 = pneg %p71
        %p602 = pneg %p68
        %p603 = pneg %p92
        %p604 = pneg %p89
        %s605 = sand.u32 %s34, 1
        %s606 = scalar_lea.sflag [#allocation13], %s605
        %s607 = sand.u32 %s105, 1
        %s608 = smul.addr %s607, 16
        %s609 = scalar_lea.vmem [#allocation12], %s608
        %p610 = pneg %p118
        %p611 = pneg %p115
        %p612 = pneg %p139
        %p613 = pneg %p136
        %p614 = pneg %p160
        %p615 = pneg %p157
        %p616 = pneg %p181
        %p617 = pneg %p178
        %p618 = pneg %p202
        %p619 = pneg %p199
        %p620 = pneg %p223
        %p621 = pneg %p220
        %p622 = pneg %p244
        %p623 = pneg %p241
        %p624 = pneg %p265
        %p625 = pneg %p262
        %p626 = pneg %p286
        %p627 = pneg %p283
        %p628 = pneg %p307
        %p629 = pneg %p304
        %p630 = pneg %p328
        %p631 = pneg %p325
        %s632 = smul.u32 2, %s34
        %p634 = scmp.eq.s32.totalorder %s34, 0
        // Predicated region
        $region125: #{tpu_custom_call.1} parent=71 // pred_check
          %p635 = pneg %p634
        $region126: #{tpu_custom_call.1} parent=71 // pred_check_branch
          %637 = sbr.rel (%p635) target = $region128
        $region127: #{tpu_custom_call.1} parent=71 // pred_region
          %v638 = vld [vmem:[#allocation9] sm:$0x1]
          %v639 = vld [vmem:[#allocation14] sm:$0xf]
          %v640 = vld [vmem:[#allocation14 + $0x4] sm:$0xf]
          %v641 = vld [vmem:[#allocation14 + $0x8] sm:$0xf]
          %v642 = vld [vmem:[#allocation14 + $0xc] sm:$0xf]
          %v643 = vld [vmem:[#allocation17] sm:$0x1]
          %v645 = vlaneseq
          %v646 = vshrl.u32 %v645, 7
          %v647 = vsub.s32 0, %v646
          %v648 = vrot.slane %v643, %v647
          %v654 = vunpack.c.l.b16 %v639
          %v655 = vunpack.c.l.b16 %v640
          %v656 = vunpack.c.l.b16 %v641
          %v657 = vunpack.c.l.b16 %v642
          %v658 = vpack.c.b16 %v655, %v654
          %v659 = vpack.c.b16 %v657, %v656
          %vm662 = vcmask 261120
          %v664 = vsel %vm662, %v638, 0
          %666 = vmatprep.subr.bf16.mxu0 0
          %667 = vmatpush1.bf16.msra.mxu0 %v658
          %668 = vmatprep.subr.bf16.mxu0 0
          %669 = vmatpush1.bf16.msra.mxu0 %v659
          %670 = vmatprep.subr.bf16.mxu0 0
          %671 = vmatpush1.bf16.msra.mxu0 0
          %672 = vmatprep.subr.bf16.mxu0 0
          %673 = vmatpush1.bf16.msra.mxu0 0
          %674 = vmatprep.subr.bf16.mxu0 0
          %675 = vmatpush1.bf16.msra.mxu0 0
          %676 = vmatprep.subr.bf16.mxu0 0
          %677 = vmatpush1.bf16.msra.mxu0 0
          %678 = vmatprep.subr.bf16.mxu0 0
          %679 = vmatpush1.bf16.msra.mxu0 0
          %680 = vmatprep.subr.bf16.mxu0 0
          %681 = vmatpush1.bf16.msra.mxu0 0
          %682 = vmatprep.subr.bf16.mxu0 0
          %683 = vmatpush1.bf16.msra.mxu0 0
          %684 = vmatprep.subr.bf16.mxu0 0
          %685 = vmatpush1.bf16.msra.mxu0 0
          %686 = vmatprep.subr.bf16.mxu0 0
          %687 = vmatpush1.bf16.msra.mxu0 0
          %688 = vmatprep.subr.bf16.mxu0 0
          %689 = vmatpush1.bf16.msra.mxu0 0
          %690 = vmatprep.subr.bf16.mxu0 0
          %691 = vmatpush1.bf16.msra.mxu0 0
          %692 = vmatprep.subr.bf16.mxu0 0
          %693 = vmatpush1.bf16.msra.mxu0 0
          %694 = vmatprep.subr.bf16.mxu0 0
          %695 = vmatpush1.bf16.msra.mxu0 0
          %696 = vmatprep.subr.bf16.mxu0 0
          %697 = vmatpush1.bf16.msra.mxu0 0
          %698 = vmatprep.mubr.bf16.mxu0 0
          %699 = vmatmul.mubr.bf16.gmra.mrb[0].mxu0 %v664
          %v700 = vpop.f32.mrb[0].mxu0
          %v701 = vadd.f32 %v648, %v700
          %v702 = vpop.f32.mrb[0].mxu0
          %v703 = vpop.f32.mrb[0].mxu0
          %v704 = vpop.f32.mrb[0].mxu0
          %705 = vdwg.mxu0
          %vm706 = vcmask 254976
          %707 = vst.msk [vmem:[#allocation2] sm:$0x3] %vm706, %v701
          %vm708 = vcmask 1024
          %709 = vst.msk [vmem:[#allocation3] sm:$0x3] %vm708, -inf
          %710 = vst.msk [vmem:[#allocation4] sm:$0x3] %vm708, 0.0
          %711 = vst.msk [vmem:[#allocation5] sm:$0x3] %vm706, 0.0
        $region128: #{tpu_custom_call.1} parent=71 // pred_fallthru
          _
        %v712 = vld [vmem:[%s558] sm:$0xf]
        %v713 = vld [vmem:[%s558 + $0x4] sm:$0xf]
        %v714 = vld [vmem:[%s558 + $0x8] sm:$0xf]
        %v715 = vld [vmem:[%s558 + $0xc] sm:$0xf]
        %v716 = vld [vmem:[#allocation15] sm:$0xf]
        %v717 = vld [vmem:[#allocation15 + $0x4] sm:$0xf]
        %v718 = vld [vmem:[#allocation15 + $0x8] sm:$0xf]
        %v719 = vld [vmem:[#allocation15 + $0xc] sm:$0xf]
        %v724 = vunpack.c.l.b16 %v712
        %v725 = vunpack.c.l.b16 %v713
        %v726 = vunpack.c.l.b16 %v714
        %v727 = vunpack.c.l.b16 %v715
        %v728 = vpack.c.b16 %v725, %v724
        %v729 = vpack.c.b16 %v727, %v726
        %v734 = vunpack.c.l.b16 %v716
        %v735 = vunpack.c.l.b16 %v717
        %v736 = vunpack.c.l.b16 %v718
        %v737 = vunpack.c.l.b16 %v719
        %v738 = vpack.c.b16 %v735, %v734
        %v739 = vpack.c.b16 %v737, %v736
        %vm742 = vcmask 261120
        %v744 = vsel %vm742, %v728, 0
        %v747 = vsel %vm742, %v729, 0
        %749 = vmatprep.subr.bf16.mxu0 0
        %750 = vmatpush1.bf16.msra.mxu0 %v738
        %751 = vmatprep.subr.bf16.mxu0 0
        %752 = vmatpush1.bf16.msra.mxu0 %v739
        %753 = vmatprep.subr.bf16.mxu0 0
        %754 = vmatpush1.bf16.msra.mxu0 0
        %755 = vmatprep.subr.bf16.mxu0 0
        %756 = vmatpush1.bf16.msra.mxu0 0
        %757 = vmatprep.subr.bf16.mxu0 0
        %758 = vmatpush1.bf16.msra.mxu0 0
        %759 = vmatprep.subr.bf16.mxu0 0
        %760 = vmatpush1.bf16.msra.mxu0 0
        %761 = vmatprep.subr.bf16.mxu0 0
        %762 = vmatpush1.bf16.msra.mxu0 0
        %763 = vmatprep.subr.bf16.mxu0 0
        %764 = vmatpush1.bf16.msra.mxu0 0
        %765 = vmatprep.subr.bf16.mxu0 0
        %766 = vmatpush1.bf16.msra.mxu0 0
        %767 = vmatprep.subr.bf16.mxu0 0
        %768 = vmatpush1.bf16.msra.mxu0 0
        %769 = vmatprep.subr.bf16.mxu0 0
        %770 = vmatpush1.bf16.msra.mxu0 0
        %771 = vmatprep.subr.bf16.mxu0 0
        %772 = vmatpush1.bf16.msra.mxu0 0
        %773 = vmatprep.subr.bf16.mxu0 0
        %774 = vmatpush1.bf16.msra.mxu0 0
        %775 = vmatprep.subr.bf16.mxu0 0
        %776 = vmatpush1.bf16.msra.mxu0 0
        %777 = vmatprep.subr.bf16.mxu0 0
        %778 = vmatpush1.bf16.msra.mxu0 0
        %779 = vmatprep.subr.bf16.mxu0 0
        %780 = vmatpush1.bf16.msra.mxu0 0
        %781 = vmatprep.mubr.bf16.mxu0 0
        %782 = vmatmul.mubr.bf16.gmra.mrb[0].mxu0 %v744
        %v783 = vpop.f32.mrb[0].mxu0
        %v784 = vadd.f32 0.0, %v783
        %v785 = vpop.f32.mrb[0].mxu0
        %v786 = vpop.f32.mrb[0].mxu0
        %v787 = vadd.f32 0.0, %v786
        %v788 = vpop.f32.mrb[0].mxu0
        %789 = vmatprep.mubr.bf16.mxu0 0
        %790 = vmatmul.mubr.bf16.gmra.mrb[0].mxu0 %v747
        %v791 = vpop.f32.mrb[0].mxu0
        %v792 = vadd.f32 0.0, %v791
        %v793 = vpop.f32.mrb[0].mxu0
        %v794 = vpop.f32.mrb[0].mxu0
        %v795 = vadd.f32 0.0, %v794
        %v796 = vpop.f32.mrb[0].mxu0
        %797 = vdwg.mxu0
        %v798 = vld [vmem:[#allocation2] sm:$0x3]
        %v801 = vunpack.c.l.s4 1966171168
        %v802 = vunpack.c.0.s8 %v801
        %v803 = vlaneseq
        %v804 = vshrl.u32 %v803, 7
        %v805 = vsub.s32 %v802, %v804
        %v806 = vrot.slane %v798, %v805
        %v807 = vcombine.high %v806, %v806
        %v809 = vunpack.c.l.s4 1966171168
        %v810 = vunpack.c.0.s8 %v809
        %v811 = vlaneseq
        %v812 = vshrl.u32 %v811, 7
        %v813 = vsub.s32 %v810, %v812
        %v814 = vrot.slane %v806, %v813
        %v816 = vunpack.c.l.s4 1966171168
        %v817 = vunpack.c.0.s8 %v816
        %v818 = vlaneseq
        %v819 = vshrl.u32 %v818, 7
        %v820 = vsub.s32 %v817, %v819
        %v821 = vrot.slane %v807, %v820
        %v822 = vlaneseq
        %v823 = vshrl.u32 %v822, 7
        %v824 = vsub.s32 0, %v823
        %v825 = vrot.slane %v814, %v824
        %v826 = vlaneseq
        %v827 = vshrl.u32 %v826, 7
        %v828 = vsub.s32 0, %v827
        %v829 = vrot.slane %v821, %v828
        %v832 = vadd.f32 %v784, %v825
        %v833 = vadd.f32 %v787, %v825
        %v834 = vadd.f32 %v792, %v829
        %v835 = vadd.f32 %v795, %v829
        %v836 = vtanh.pop %v832
        %v837 = vtanh.pop %v833
        %v838 = vtanh.pop %v834
        %v839 = vtanh.pop %v835
        %v840 = vld [vmem:[#allocation18] sm:$0x1]
        %v842 = vlaneseq
        %v843 = vshrl.u32 %v842, 7
        %v844 = vsub.s32 0, %v843
        %v845 = vrot.slane %v840, %v844
        %v847 = vmul.f32 %v836, %v845
        %v848 = vmul.f32 %v837, %v845
        %v849 = vmul.f32 %v838, %v845
        %v850 = vmul.f32 %v839, %v845
        %v851 = vsel %vm742, %v847, 0.0
        %852 = vadd.xlane.f32.xlu0 %v851
        %v853 = vpop.xlane.xlu0 %852
        %v854 = vsel %vm742, %v848, 0.0
        %855 = vadd.xlane.f32.xlu0 %v854
        %v856 = vpop.xlane.xlu0 %855
        %v857 = vsel %vm742, %v849, 0.0
        %858 = vadd.xlane.f32.xlu0 %v857
        %v859 = vpop.xlane.xlu0 %858
        %v860 = vsel %vm742, %v850, 0.0
        %861 = vadd.xlane.f32.xlu0 %v860
        %v862 = vpop.xlane.xlu0 %861
        %v863 = vld [vmem:[#allocation3] sm:$0x3]
        %v868 = vlaneseq
        %v869 = vand.u32 %v868, 127
        %v870 = vlaneseq
        %v871 = vshrl.u32 %v870, 7
        %v872 = vsub.s32 %v869, %v871
        %v873 = vrot.slane %v853, %v872
        %v874 = vadd.s32 %v869, 4294967288
        %v875 = vlaneseq
        %v876 = vshrl.u32 %v875, 7
        %v877 = vsub.s32 %v874, %v876
        %v878 = vrot.slane %v856, %v877
        %vm879 = vcmask 130112
        %v880 = vsel %vm879, %v878, %v873
        %v881 = vlaneseq
        %v882 = vshrl.u32 %v881, 7
        %v883 = vsub.s32 %v869, %v882
        %v884 = vrot.slane %v859, %v883
        %v885 = vlaneseq
        %v886 = vshrl.u32 %v885, 7
        %v887 = vsub.s32 %v874, %v886
        %v888 = vrot.slane %v862, %v887
        %v889 = vsel %vm879, %v888, %v884
        %vm890 = vcmask 1041409
        %v891 = vsel %vm890, %v889, %v880
        %vm893 = vcmask 123904
        %v894 = vsel %vm893, %v891, -inf
        %895 = vmax.xlane.f32.xlu0 %v894
        %v896 = vpop.xlane.xlu0 %895
        %v897 = vmax.f32 %v863, %v896
        %v898 = vsub.f32 %v863, %v897
        %v899 = vmul.f32 %v898, 1.442695
        %v900 = vpow.pop %v899
        %902 = vset.pattern.permute.xlu0 0
        %903 = vperm.xlu0 %902, %v897
        %v904 = vpop.permute.xlu0 %903
        %v905 = vlaneseq
        %v906 = vshrl.u32 %v905, 7
        %v907 = vsub.s32 0, %v906
        %v908 = vrot.slane %v904, %v907
        %v909 = vlaneseq
        %v910 = vshrl.u32 %v909, 7
        %v911 = vsub.s32 1, %v910
        %v912 = vrot.slane %v904, %v911
        %v915 = vsub.f32 %v853, %v908
        %v916 = vsub.f32 %v856, %v908
        %v917 = vsub.f32 %v859, %v912
        %v918 = vsub.f32 %v862, %v912
        %v919 = vmul.f32 %v915, 1.442695
        %v920 = vpow.pop %v919
        %v921 = vmul.f32 %v916, 1.442695
        %v922 = vpow.pop %v921
        %v923 = vmul.f32 %v917, 1.442695
        %v924 = vpow.pop %v923
        %v925 = vmul.f32 %v918, 1.442695
        %v926 = vpow.pop %v925
        %v927 = vld [vmem:[#allocation4] sm:$0x3]
        %v928 = vmul.f32 %v900, %v927
        %933 = vset.pattern.permute.xlu0 0
        %934 = vperm.xlu0 %933, %v920
        %v935 = vpop.permute.xlu0 %934
        %936 = vset.pattern.permute.xlu0 0
        %937 = vperm.xlu0 %936, %v922
        %v938 = vpop.permute.xlu0 %937
        %939 = vset.pattern.permute.xlu0 0
        %940 = vperm.xlu0 %939, %v924
        %v941 = vpop.permute.xlu0 %940
        %942 = vset.pattern.permute.xlu0 0
        %943 = vperm.xlu0 %942, %v926
        %v944 = vpop.permute.xlu0 %943
        %v945 = vlaneseq
        %v946 = vshrl.u32 %v945, 7
        %v947 = vsub.s32 %v869, %v946
        %v948 = vrot.slane %v935, %v947
        %v949 = vlaneseq
        %v950 = vshrl.u32 %v949, 7
        %v951 = vsub.s32 %v874, %v950
        %v952 = vrot.slane %v938, %v951
        %v953 = vsel %vm879, %v952, %v948
        %v954 = vlaneseq
        %v955 = vshrl.u32 %v954, 7
        %v956 = vsub.s32 %v869, %v955
        %v957 = vrot.slane %v941, %v956
        %v958 = vlaneseq
        %v959 = vshrl.u32 %v958, 7
        %v960 = vsub.s32 %v874, %v959
        %v961 = vrot.slane %v944, %v960
        %v962 = vsel %vm879, %v961, %v957
        %v963 = vsel %vm890, %v962, %v953
        %v965 = vsel %vm893, %v963, 0.0
        %966 = vadd.xlane.f32.xlu0 %v965
        %v967 = vpop.xlane.xlu0 %966
        %v968 = vadd.f32 %v928, %v967
        %vm969 = vcmask 1024
        %970 = vst.msk [vmem:[#allocation4] sm:$0x3] %vm969, %v968
        %v971 = vld [vmem:[#allocation5] sm:$0x3]
        %973 = vset.pattern.permute.xlu0 0
        %974 = vperm.xlu0 %973, %v900
        %v975 = vpop.permute.xlu0 %974
        %v977 = vmul.f32 %v975, %v971
        %v978 = vunpack.c.l.bf16 %v712
        %v979 = vunpack.c.l.bf16 %v713
        %v980 = vunpack.c.l.bf16 %v714
        %v981 = vunpack.c.l.bf16 %v715
        %v986 = vmul.f32 %v935, %v978
        %v987 = vmul.f32 %v938, %v979
        %v988 = vmul.f32 %v941, %v980
        %v989 = vmul.f32 %v944, %v981
        %v990 = vsel %vm742, %v986, 0.0
        %v991 = vsel %vm742, %v987, 0.0
        %v992 = vadd.f32 %v990, %v991
        %v993 = vrot.slane %v992, 4
        %v994 = vadd.f32 %v992, %v993
        %v995 = vrot.slane %v994, 2
        %v996 = vadd.f32 %v994, %v995
        %v997 = vrot.slane %v996, 1
        %v998 = vadd.f32 %v996, %v997
        %v999 = vsel %vm742, %v988, 0.0
        %v1000 = vsel %vm742, %v989, 0.0
        %v1001 = vadd.f32 %v999, %v1000
        %v1002 = vrot.slane %v1001, 4
        %v1003 = vadd.f32 %v1001, %v1002
        %v1004 = vrot.slane %v1003, 2
        %v1005 = vadd.f32 %v1003, %v1004
        %v1006 = vrot.slane %v1005, 1
        %v1007 = vadd.f32 %v1005, %v1006
        %v1010 = vsel %vm890, %v1007, %v998
        %v1012 = vadd.f32 %v977, %v1010
        %vm1013 = vcmask 254976
        %1014 = vst.msk [vmem:[#allocation5] sm:$0x3] %vm1013, %v1012
        %1015 = vst.msk [vmem:[#allocation3] sm:$0x3] %vm969, %v897
        %p1016 = scmp.eq.s32.totalorder %s34, 1
        // Predicated region
        $region129: #{tpu_custom_call.1} parent=71 // pred_check
          %p1017 = pneg %p1016
        $region130: #{tpu_custom_call.1} parent=71 // pred_check_branch
          %1019 = sbr.rel (%p1017) target = $region132
        $region131: #{tpu_custom_call.1} parent=71 // pred_region
          %v1020 = vld [vmem:[#allocation5] sm:$0x3]
          %v1021 = vld [vmem:[#allocation4] sm:$0x3]
          %v1022 = vrcp.pop %v1021
          %1024 = vset.pattern.permute.xlu0 0
          %1025 = vperm.xlu0 %1024, %v1022
          %v1026 = vpop.permute.xlu0 %1025
          %v1028 = vmul.f32 %v1020, %v1026
          %v1029 = vld [vmem:[#allocation6] sm:$0x1]
          %v1030 = vld [vmem:[#allocation20] sm:$0xf]
          %v1031 = vld [vmem:[#allocation20 + $0x4] sm:$0xf]
          %v1032 = vld [vmem:[#allocation20 + $0x8] sm:$0xf]
          %v1033 = vld [vmem:[#allocation20 + $0xc] sm:$0xf]
          %v1034 = vld [vmem:[#allocation20 + $0x10] sm:$0xf]
          %v1035 = vld [vmem:[#allocation20 + $0x14] sm:$0xf]
          %v1036 = vpack.c.bf16 %v1028, %v1028
          %v1037 = vld [vmem:[#allocation21] sm:$0xf]
          %v1038 = vld [vmem:[#allocation21 + $0x4] sm:$0xf]
          %v1039 = vld [vmem:[#allocation21 + $0x8] sm:$0xf]
          %v1040 = vld [vmem:[#allocation21 + $0xc] sm:$0xf]
          %v1045 = vunpack.c.l.b16 %v1037
          %v1046 = vunpack.c.l.b16 %v1038
          %v1047 = vunpack.c.l.b16 %v1039
          %v1048 = vunpack.c.l.b16 %v1040
          %v1049 = vpack.c.b16 %v1046, %v1045
          %v1050 = vpack.c.b16 %v1048, %v1047
          %v1054 = vsel %vm742, %v1036, 0
          %1056 = vmatprep.subr.bf16.mxu0 0
          %1057 = vmatpush1.bf16.msra.mxu0 %v1049
          %1058 = vmatprep.subr.bf16.mxu0 0
          %1059 = vmatpush1.bf16.msra.mxu0 %v1050
          %1060 = vmatprep.subr.bf16.mxu0 0
          %1061 = vmatpush1.bf16.msra.mxu0 0
          %1062 = vmatprep.subr.bf16.mxu0 0
          %1063 = vmatpush1.bf16.msra.mxu0 0
          %1064 = vmatprep.subr.bf16.mxu0 0
          %1065 = vmatpush1.bf16.msra.mxu0 0
          %1066 = vmatprep.subr.bf16.mxu0 0
          %1067 = vmatpush1.bf16.msra.mxu0 0
          %1068 = vmatprep.subr.bf16.mxu0 0
          %1069 = vmatpush1.bf16.msra.mxu0 0
          %1070 = vmatprep.subr.bf16.mxu0 0
          %1071 = vmatpush1.bf16.msra.mxu0 0
          %1072 = vmatprep.subr.bf16.mxu0 0
          %1073 = vmatpush1.bf16.msra.mxu0 0
          %1074 = vmatprep.subr.bf16.mxu0 0
          %1075 = vmatpush1.bf16.msra.mxu0 0
          %1076 = vmatprep.subr.bf16.mxu0 0
          %1077 = vmatpush1.bf16.msra.mxu0 0
          %1078 = vmatprep.subr.bf16.mxu0 0
          %1079 = vmatpush1.bf16.msra.mxu0 0
          %1080 = vmatprep.subr.bf16.mxu0 0
          %1081 = vmatpush1.bf16.msra.mxu0 0
          %1082 = vmatprep.subr.bf16.mxu0 0
          %1083 = vmatpush1.bf16.msra.mxu0 0
          %1084 = vmatprep.subr.bf16.mxu0 0
          %1085 = vmatpush1.bf16.msra.mxu0 0
          %1086 = vmatprep.subr.bf16.mxu0 0
          %1087 = vmatpush1.bf16.msra.mxu0 0
          %1088 = vmatprep.mubr.bf16.mxu0 0
          %1089 = vmatmul.mubr.bf16.gmra.mrb[0].mxu0 %v1054
          %v1090 = vpop.f32.mrb[0].mxu0
          %v1091 = vadd.f32 0.0, %v1090
          %v1092 = vpop.f32.mrb[0].mxu0
          %v1093 = vpop.f32.mrb[0].mxu0
          %v1094 = vpop.f32.mrb[0].mxu0
          %1095 = vdwg.mxu0
          %v1102 = vunpack.c.l.b16 %v1030
          %v1103 = vunpack.c.l.b16 %v1031
          %v1104 = vunpack.c.l.b16 %v1032
          %v1105 = vunpack.c.l.b16 %v1033
          %v1106 = vunpack.c.l.b16 %v1034
          %v1107 = vunpack.c.l.b16 %v1035
          %v1108 = vpack.c.b16 %v1103, %v1102
          %v1109 = vpack.c.b16 %v1105, %v1104
          %v1110 = vpack.c.b16 %v1107, %v1106
          %vm1114 = vcmask 392192
          %v1116 = vsel %vm1114, %v1029, 0
          %1118 = vmatprep.subr.bf16.mxu0 0
          %1119 = vmatpush1.bf16.msra.mxu0 %v1108
          %1120 = vmatprep.subr.bf16.mxu0 0
          %1121 = vmatpush1.bf16.msra.mxu0 %v1109
          %1122 = vmatprep.subr.bf16.mxu0 0
          %1123 = vmatpush1.bf16.msra.mxu0 %v1110
          %1124 = vmatprep.subr.bf16.mxu0 0
          %1125 = vmatpush1.bf16.msra.mxu0 0
          %1126 = vmatprep.subr.bf16.mxu0 0
          %1127 = vmatpush1.bf16.msra.mxu0 0
          %1128 = vmatprep.subr.bf16.mxu0 0
          %1129 = vmatpush1.bf16.msra.mxu0 0
          %1130 = vmatprep.subr.bf16.mxu0 0
          %1131 = vmatpush1.bf16.msra.mxu0 0
          %1132 = vmatprep.subr.bf16.mxu0 0
          %1133 = vmatpush1.bf16.msra.mxu0 0
          %1134 = vmatprep.subr.bf16.mxu0 0
          %1135 = vmatpush1.bf16.msra.mxu0 0
          %1136 = vmatprep.subr.bf16.mxu0 0
          %1137 = vmatpush1.bf16.msra.mxu0 0
          %1138 = vmatprep.subr.bf16.mxu0 0
          %1139 = vmatpush1.bf16.msra.mxu0 0
          %1140 = vmatprep.subr.bf16.mxu0 0
          %1141 = vmatpush1.bf16.msra.mxu0 0
          %1142 = vmatprep.subr.bf16.mxu0 0
          %1143 = vmatpush1.bf16.msra.mxu0 0
          %1144 = vmatprep.subr.bf16.mxu0 0
          %1145 = vmatpush1.bf16.msra.mxu0 0
          %1146 = vmatprep.subr.bf16.mxu0 0
          %1147 = vmatpush1.bf16.msra.mxu0 0
          %1148 = vmatprep.subr.bf16.mxu0 0
          %1149 = vmatpush1.bf16.msra.mxu0 0
          %1150 = vmatprep.mubr.bf16.mxu0 0
          %1151 = vmatmul.mubr.bf16.gmra.mrb[0].mxu0 %v1116
          %v1152 = vpop.f32.mrb[0].mxu0
          %v1153 = vadd.f32 %v1091, %v1152
          %v1154 = vpop.f32.mrb[0].mxu0
          %v1155 = vpop.f32.mrb[0].mxu0
          %v1156 = vpop.f32.mrb[0].mxu0
          %1157 = vdwg.mxu0
          %v1158 = vld [vmem:[#allocation23] sm:$0x1]
          %v1160 = vlaneseq
          %v1161 = vshrl.u32 %v1160, 7
          %v1162 = vsub.s32 0, %v1161
          %v1163 = vrot.slane %v1158, %v1162
          %v1165 = vadd.f32 %v1153, %v1163
          %v1166 = vmul.f32 %v1165, 0.5
          %v1167 = vtanh.pop %v1166
          %v1168 = vadd.f32 %v1167, 1.0
          %v1169 = vmul.f32 %v1168, 0.5
          %v1170 = vtanh.pop %v1165
          %v1171 = vld [vmem:[#allocation11] sm:$0x3]
          %1173 = vrot.lane.b32.xlu0 %v1171, 32
          %v1174 = vpop.permute.xlu0 %1173
          %v1176 = vmul.f32 %v1169, %v1174
          %1178 = vrot.lane.b32.xlu0 %v1170, 64
          %v1179 = vpop.permute.xlu0 %1178
          %v1181 = vmul.f32 %v1169, %v1179
          %1183 = vrot.lane.b32.xlu0 %v1181, 32
          %v1184 = vpop.permute.xlu0 %1183
          %v1186 = vadd.f32 %v1176, %v1184
          %v1187 = vtanh.pop %v1186
          %1189 = vrot.lane.b32.xlu0 %v1187, 64
          %v1190 = vpop.permute.xlu0 %1189
          %v1192 = vmul.f32 %v1169, %v1190
          %1194 = vrot.lane.b32.xlu0 %v1192, 32
          %v1195 = vpop.permute.xlu0 %1194
          %1198 = vrot.lane.b32.xlu0 %v1028, 32
          %v1199 = vpop.permute.xlu0 %1198
          %v1201 = vsel %vm742, %v1195, %v1199
          %v1202 = vpack.c.bf16 %v1201, %v1201
          %v1203 = vld [vmem:[#allocation24] sm:$0xf]
          %v1204 = vld [vmem:[#allocation24 + $0x4] sm:$0xf]
          %v1205 = vld [vmem:[#allocation24 + $0x8] sm:$0xf]
          %v1206 = vld [vmem:[#allocation24 + $0xc] sm:$0xf]
          %v1207 = vld [vmem:[#allocation24 + $0x10] sm:$0xf]
          %v1208 = vld [vmem:[#allocation24 + $0x14] sm:$0xf]
          %v1209 = vld [vmem:[#allocation24 + $0x18] sm:$0xf]
          %v1210 = vld [vmem:[#allocation24 + $0x1c] sm:$0xf]
          %v1211 = vld [vmem:[#allocation26] sm:$0x1]
          %v1213 = vlaneseq
          %v1214 = vshrl.u32 %v1213, 7
          %v1215 = vsub.s32 0, %v1214
          %v1216 = vrot.slane %v1211, %v1215
          %v1226 = vunpack.c.l.b16 %v1203
          %v1227 = vunpack.c.l.b16 %v1204
          %v1228 = vunpack.c.l.b16 %v1205
          %v1229 = vunpack.c.l.b16 %v1206
          %v1230 = vunpack.c.l.b16 %v1207
          %v1231 = vunpack.c.l.b16 %v1208
          %v1232 = vunpack.c.l.b16 %v1209
          %v1233 = vunpack.c.l.b16 %v1210
          %v1234 = vpack.c.b16 %v1227, %v1226
          %v1235 = vpack.c.b16 %v1229, %v1228
          %v1236 = vpack.c.b16 %v1231, %v1230
          %v1237 = vpack.c.b16 %v1233, %v1232
          %vm1242 = vcmask 523264
          %v1244 = vsel %vm1242, %v1202, 0
          %1246 = vmatprep.subr.bf16.mxu0 0
          %1247 = vmatpush1.bf16.msra.mxu0 %v1234
          %1248 = vmatprep.subr.bf16.mxu0 0
          %1249 = vmatpush1.bf16.msra.mxu0 %v1235
          %1250 = vmatprep.subr.bf16.mxu0 0
          %1251 = vmatpush1.bf16.msra.mxu0 %v1236
          %1252 = vmatprep.subr.bf16.mxu0 0
          %1253 = vmatpush1.bf16.msra.mxu0 %v1237
          %1254 = vmatprep.subr.bf16.mxu0 0
          %1255 = vmatpush1.bf16.msra.mxu0 0
          %1256 = vmatprep.subr.bf16.mxu0 0
          %1257 = vmatpush1.bf16.msra.mxu0 0
          %1258 = vmatprep.subr.bf16.mxu0 0
          %1259 = vmatpush1.bf16.msra.mxu0 0
          %1260 = vmatprep.subr.bf16.mxu0 0
          %1261 = vmatpush1.bf16.msra.mxu0 0
          %1262 = vmatprep.subr.bf16.mxu0 0
          %1263 = vmatpush1.bf16.msra.mxu0 0
          %1264 = vmatprep.subr.bf16.mxu0 0
          %1265 = vmatpush1.bf16.msra.mxu0 0
          %1266 = vmatprep.subr.bf16.mxu0 0
          %1267 = vmatpush1.bf16.msra.mxu0 0
          %1268 = vmatprep.subr.bf16.mxu0 0
          %1269 = vmatpush1.bf16.msra.mxu0 0
          %1270 = vmatprep.subr.bf16.mxu0 0
          %1271 = vmatpush1.bf16.msra.mxu0 0
          %1272 = vmatprep.subr.bf16.mxu0 0
          %1273 = vmatpush1.bf16.msra.mxu0 0
          %1274 = vmatprep.subr.bf16.mxu0 0
          %1275 = vmatpush1.bf16.msra.mxu0 0
          %1276 = vmatprep.subr.bf16.mxu0 0
          %1277 = vmatpush1.bf16.msra.mxu0 0
          %1278 = vmatprep.mubr.bf16.mxu0 0
          %1279 = vmatmul.mubr.bf16.gmra.mrb[0].mxu0 %v1244
          %v1280 = vpop.f32.mrb[0].mxu0
          %v1281 = vadd.f32 %v1216, %v1280
          %v1282 = vpop.f32.mrb[0].mxu0
          %v1283 = vpop.f32.mrb[0].mxu0
          %v1284 = vpop.f32.mrb[0].mxu0
          %1285 = vdwg.mxu0
          %1287 = vrot.lane.b32.xlu0 %v1281, 64
          %v1288 = vpop.permute.xlu0 %1287
          %v1290 = vsel %vm742, %v1195, %v1186
          %v1291 = vsel %vm1242, %v1290, %v1288
          %vm1292 = vcmask 564224
          %v1293 = vsel %vm1292, %v1291, 0.0
          %1294 = vst [vmem:[#allocation27] sm:$0x3] %v1293
        $region132: #{tpu_custom_call.1} parent=71 // pred_fallthru
          _
        // Predicated region
        $region133: #{tpu_custom_call.1} parent=71 // pred_check
          %p1295 = pneg %p325
        $region134: #{tpu_custom_call.1} parent=71 // pred_check_branch
          %1297 = sbr.rel (%p1295) target = $region136
        $region135: #{tpu_custom_call.1} parent=71 // pred_region
          %s1299 = ssub.s32 32, 32
          %1300 = vsyncadd [#allocation8], %s1299
          %s1302 = sshll.u32 [#allocation27], 4
          %s1303 = int_to_ptr.vmem [resolvable:$true] %s1302
          %1305 = dma.vmem_to_hbm [thread:$0]  %s1303, 32, %s13, [#allocation8]
        $region136: #{tpu_custom_call.1} parent=71 // pred_fallthru
          _
        // Predicated region
        $region137: #{tpu_custom_call.1} parent=71 // pred_check
          %p1306 = pneg %p325
        $region138: #{tpu_custom_call.1} parent=71 // pred_check_branch
          %1308 = sbr.rel (%p1306) target = $region140
        $region139: #{tpu_custom_call.1} parent=71 // pred_region
          %1309 = dma.done [#allocation8], 32
        $region140: #{tpu_custom_call.1} parent=71 // pred_fallthru
          _
      $region72: #{tpu_custom_call.1} parent=5 // pred_fallthru
        _
      %p1310 = scmp.le.s32.totalorder 2, %s29
      // Predicated region
      $region141: #{tpu_custom_call.1} parent=5 // pred_check
        %p1311 = pneg %p1310
      $region142: #{tpu_custom_call.1} parent=5 // pred_check_branch
        %1313 = sbr.rel (%p1311) target = $region144
      $region143: #{tpu_custom_call.1} parent=5 // pred_region
        %s1314 = ssub.s32 %s29, 2
      $region144: #{tpu_custom_call.1} parent=5 // pred_fallthru
        _
    $region6: #{tpu_custom_call.1} parent=1 // loop_footer
      %s33 = sadd.s32 1, %s29
    $region7: #{tpu_custom_call.1} parent=1 // loop_footer_branch
      %28 = sbr.rel target = $region3
    $region8: #{tpu_custom_call.1} parent=1 // loop_exit
      _
    %1315 = vsyncpa [#allocation7], 1
    %s1316 = scalar_lea.sflag [#allocation7], 1
    %1317 = vsyncpa %s1316, 1
    %1318 = vsyncpa [#allocation10], 1
    %1319 = vsyncpa [#allocation13], 1
    %s1320 = scalar_lea.sflag [#allocation13], 1
    %1321 = vsyncpa %s1320, 1
    %1322 = vsyncpa [#allocation16], 1
    %1323 = vsyncpa [#allocation19], 1
    %1324 = vsyncpa [#allocation22], 1
    %1325 = vsyncpa [#allocation25], 1
    %1326 = vsyncpa [#allocation8], 1
    %s1327 = scalar_lea.sflag [#allocation8], 1
    %1328 = vsyncpa %s1327, 1

</llo_original>
